<compile_context>
chip_gen: v7x
topology: tpu7x:2x2x1
jax: 0.10.0
libtpu: 0.0.40
codegen_flags: <defaults>
</compile_context>

<pallas_src>
import jax
import jax.numpy as jnp
from jax.experimental import pallas as pl
from jax.experimental.pallas import tpu as pltpu


def sine_layer_kernel(x_ref, w_ref, b_ref, o_ref):
    # x_ref: (tm, K)  w_ref: (K, M)  b_ref: (1, M)  o_ref: (tm, M)
    z = jnp.dot(x_ref[...], w_ref[...], preferred_element_type=jnp.float32)
    o_ref[...] = jnp.sin(z + b_ref[...]).astype(o_ref.dtype)


def _pick_fold(input_dim, output_dim):
    """Smallest row-fold factor making the folded output lane-dense (multiple of
    128 lanes), then doubled a little to fatten the MXU contraction while the
    block-diagonal folded weight stays small (resident in VMEM)."""
    fold = 1
    while (fold * output_dim) % 128 != 0 and fold < 128:
        fold += 1
    if (fold * output_dim) % 128 != 0 or \
            4 * (fold * input_dim) * (fold * output_dim) > (8 << 20):
        return 1  # give up on folding; correctness unaffected (stores become masked)
    while (fold * input_dim < 128 and fold * output_dim < 512 and
           4 * (2 * fold * input_dim) * (2 * fold * output_dim) <= (2 << 20)):
        fold *= 2
    return fold


def sine_layer(x, w_t, b, *, omega_0=30.0, block_rows=512, fold=None):
    """x: (N, input_dim) f32, w_t: (input_dim, output_dim) (transposed nn.Linear
    weight), b: (output_dim,).  Returns sin(omega_0 * (x @ w_t + b))."""
    N, input_dim = x.shape
    output_dim = w_t.shape[1]
    out_dtype = x.dtype

    # Fold omega_0 into the parameters: sin(w0*(xW + b)) == sin(x(w0 W) + w0 b).
    w_s = (omega_0 * w_t).astype(jnp.float32)
    b_s = (omega_0 * b).astype(jnp.float32)

    if fold is None:
        fold = _pick_fold(input_dim, output_dim)

    k_f = fold * input_dim      # folded contraction dim
    m_f = fold * output_dim     # folded (lane-dense) output dim

    # Block-diagonal folded weight and tiled bias (one-time transform).
    eye = jnp.eye(fold, dtype=jnp.float32)
    w_fold = (eye[:, None, :, None] * w_s[None, :, None, :]).reshape(k_f, m_f)
    b_fold = jnp.tile(b_s, (fold,)).reshape(1, m_f)

    # Pad rows so they fold and tile evenly (folded row tile multiple of 8 sublanes).
    n_rows = -(-N // fold)                                  # ceil(N / fold)
    tm = min(block_rows, ((n_rows + 7) // 8) * 8)           # cap tile to problem size
    n_rows_pad = -(-n_rows // tm) * tm
    n_pad = n_rows_pad * fold
    if n_pad != N:
        x = jnp.pad(x, ((0, n_pad - N), (0, 0)))
    x_f = x.astype(jnp.float32).reshape(n_rows_pad, k_f)    # free, layout-identical

    grid = (n_rows_pad // tm,)

    # Scoped VMEM actually needed per step (double-buffered in/out + weight + bias),
    # with 2x headroom; capped well under v7x's 64 MiB physical VMEM.
    vmem_bytes = 4 * (2 * tm * k_f + 2 * tm * m_f + 2 * k_f * m_f + m_f)
    vmem_limit = int(min(48 << 20, max(2 * vmem_bytes, 8 << 20)))

    cost = pl.CostEstimate(
        flops=2 * n_pad * input_dim * output_dim,
        transcendentals=n_pad * output_dim,
        bytes_accessed=4 * (n_pad * input_dim + k_f * m_f + n_pad * output_dim),
    )

    out_f = pl.pallas_call(
        sine_layer_kernel,
        out_shape=jax.ShapeDtypeStruct((n_rows_pad, m_f), out_dtype),
        grid_spec=pltpu.PrefetchScalarGridSpec(
            num_scalar_prefetch=0,
            grid=grid,
            in_specs=[
                pl.BlockSpec((tm, k_f), lambda i: (i, 0)),    # folded x row tile
                pl.BlockSpec((k_f, m_f), lambda i: (0, 0)),   # whole folded weight
                pl.BlockSpec((1, m_f), lambda i: (0, 0)),     # folded bias
            ],
            out_specs=pl.BlockSpec((tm, m_f), lambda i: (i, 0)),
        ),
        compiler_params=pltpu.CompilerParams(
            dimension_semantics=("parallel",),
            vmem_limit_bytes=vmem_limit,
        ),
        cost_estimate=cost,
    )(x_f, w_fold, b_fold)

    # Un-fold: (N/fold, fold*output_dim) row-major is bit-identical to (N, output_dim).
    return out_f.reshape(n_pad, output_dim)[:N]


def init_sine_layer_params(key, input_dim, output_dim, *, is_first_layer=False,
                           omega_0=30.0, bias=True):
    """Deterministic SIREN init matching the PyTorch module's init_weights()."""
    kw, kb = jax.random.split(key)
    if is_first_layer:
        bound = 1.0 / input_dim
    else:
        bound = float(jnp.sqrt(6.0 / input_dim)) / omega_0
    # PyTorch nn.Linear.weight has shape (output_dim, input_dim); we store its
    # transpose (input_dim, output_dim) so the kernel does x @ W_t directly.
    w_t = jax.random.uniform(kw, (input_dim, output_dim), jnp.float32,
                             minval=-bound, maxval=bound)
    if bias:
        # nn.Linear default bias init: U(-1/sqrt(input_dim), 1/sqrt(input_dim))
        b_bound = 1.0 / float(jnp.sqrt(jnp.float32(input_dim)))
        b = jax.random.uniform(kb, (output_dim,), jnp.float32,
                               minval=-b_bound, maxval=b_bound)
    else:
        b = jnp.zeros((output_dim,), jnp.float32)
    return w_t, b


if __name__ == "__main__":
    key = jax.random.PRNGKey(0)
    k_x, k_p = jax.random.split(key)

    N, input_dim, output_dim = 256, 32, 64
    omega_0 = 30.0

    x = jax.random.normal(k_x, (N, input_dim), jnp.float32)
    w_t, b = init_sine_layer_params(k_p, input_dim, output_dim,
                                    is_first_layer=True, omega_0=omega_0)

    out = sine_layer(x, w_t, b, omega_0=omega_0)
    out = jax.block_until_ready(out)

    # Reference check in plain JAX.
    ref = jnp.sin(omega_0 * (x @ w_t + b[None, :]))
    assert out.shape == (N, output_dim)
    assert jnp.allclose(out, ref, atol=1e-4, rtol=1e-4), \
        float(jnp.max(jnp.abs(out - ref)))

    print("KERNEL_OK")
</pallas_src>

<mosaic_0001>
module attributes {stable_mosaic.version = 11 : i64} {
  func.func @sine_layer_kernel(%arg0: i32, %arg1: memref<64x128xf32, #tpu.memory_space<vmem>>, %arg2: memref<128x256xf32, #tpu.memory_space<vmem>>, %arg3: memref<1x256xf32, #tpu.memory_space<vmem>>, %arg4: memref<64x256xf32, #tpu.memory_space<vmem>>) attributes {dimension_semantics = [#tpu.dimension_semantics<parallel>], iteration_bounds = array<i64: 1>, scalar_prefetch = 0 : i64, scratch_operands = 0 : i64, tpu.core_type = #tpu.core_type<tc>, window_params = [{transform_indices = @transform_0, window_bounds = array<i64: 64, 128>}, {pipeline_mode = #tpu.pipeline_mode<synchronous>, transform_indices = @transform_1, window_bounds = array<i64: 128, 256>}, {pipeline_mode = #tpu.pipeline_mode<synchronous>, transform_indices = @transform_2, window_bounds = array<i64: 1, 256>}, {transform_indices = @transform_3, window_bounds = array<i64: 64, 256>}]} {
    %c0 = arith.constant 0 : index
    %c0_0 = arith.constant 0 : index
    %0 = vector.load %arg1[%c0, %c0_0] : memref<64x128xf32, #tpu.memory_space<vmem>>, vector<64x128xf32>
    %c0_1 = arith.constant 0 : index
    %c0_2 = arith.constant 0 : index
    %1 = vector.load %arg2[%c0_1, %c0_2] : memref<128x256xf32, #tpu.memory_space<vmem>>, vector<128x256xf32>
    %cst = arith.constant dense<0.000000e+00> : vector<64x256xf32>
    %2 = tpu.matmul %0, %1, %cst {dimension_numbers = #tpu.dot_dimension_numbers<[1], [0], [0], [1], [0, 0, 1, 1], [], []>} : vector<64x128xf32>, vector<128x256xf32>, vector<64x256xf32> -> vector<64x256xf32>
    %c0_3 = arith.constant 0 : index
    %c0_4 = arith.constant 0 : index
    %3 = vector.load %arg3[%c0_3, %c0_4] : memref<1x256xf32, #tpu.memory_space<vmem>>, vector<1x256xf32>
    %4 = vector.broadcast %3 : vector<1x256xf32> to vector<64x256xf32>
    %5 = arith.addf %2, %4 : vector<64x256xf32>
    %6 = math.sin %5 : vector<64x256xf32>
    %c0_5 = arith.constant 0 : index
    %c0_6 = arith.constant 0 : index
    %7 = vector.load %arg4[%c0_5, %c0_6] : memref<64x256xf32, #tpu.memory_space<vmem>>, vector<64x256xf32>
    tpu.vector_store %arg4[%c0_5, %c0_6], %6 {strides = array<i32>} : memref<64x256xf32, #tpu.memory_space<vmem>>, vector<64x256xf32>,
    return
  }
  func.func @transform_0(%arg0: i32) -> (i32, i32) {
    %c0_i32 = arith.constant 0 : i32
    %c0_i32_0 = arith.constant 0 : i32
    return %arg0, %c0_i32 : i32, i32
  }
  func.func @transform_1(%arg0: i32) -> (i32, i32) {
    %c0_i32 = arith.constant 0 : i32
    %c0_i32_0 = arith.constant 0 : i32
    %c0_i32_1 = arith.constant 0 : i32
    return %c0_i32, %c0_i32_0 : i32, i32
  }
  func.func @transform_2(%arg0: i32) -> (i32, i32) {
    %c0_i32 = arith.constant 0 : i32
    %c0_i32_0 = arith.constant 0 : i32
    %c0_i32_1 = arith.constant 0 : i32
    return %c0_i32, %c0_i32_0 : i32, i32
  }
  func.func @transform_3(%arg0: i32) -> (i32, i32) {
    %c0_i32 = arith.constant 0 : i32
    %c0_i32_0 = arith.constant 0 : i32
    return %arg0, %c0_i32 : i32, i32
  }
}

</mosaic_0001>

<llo_original>
// kernel: tpu_custom_call.1
$region0: #{tpu_custom_call.1}
  #allocation0 [shape = 'u32[]', space=smem, size = 0x4, offset = 0x4, fixed_abs, tag = 'smem constant byte address 0x4 - core index']
  #allocation1 [shape = 'u32[144,128]{1,0:T(1,128)}', space=vmem, size = 0x12000, scoped, tag = 'internal scratch']
  %s0 = inlined_call_operand.hbm [shape: f32[64,128], index: 0, kind: input, shape index: {}]
  %s1 = inlined_call_operand.hbm [shape: f32[128,256], index: 1, kind: input, shape index: {}]
  %s2 = inlined_call_operand.vmem [shape: f32[1,256], index: 2, kind: input, shape index: {}]
  %s3 = inlined_call_operand.hbm [shape: f32[64,256], index: 3, kind: output, shape index: {}]
  %s4 = sld [smem:[#allocation0]]
  $region30: #{tpu_custom_call.1} parent=0
    _
  %s6 = ssub.s32 1, %s4
  %s7 = scalar_select 0, %s6, %s4
  $region1: #{tpu_custom_call.1} parent=0
    #allocation2 [shape = 'u8[32768]{0}', space=vmem, size = 0x8000, scoped, tag = 'input window, operand 0, single buffered']
    #allocation3 [shape = 's32[1]{0}', space=sflag, size = 0x4, scoped, tag = 'scoped memory for tpu_custom_call.1']
    #allocation4 [shape = 's32[1]{0}', space=sflag, size = 0x4, scoped, tag = 'scoped memory for tpu_custom_call.1']
    #allocation5 [shape = 'u8[131072]{0}', space=vmem, size = 0x20000, scoped, tag = 'input window, operand 1, single buffered']
    #allocation6 [shape = 's32[1]{0}', space=sflag, size = 0x4, scoped, tag = 'scoped memory for tpu_custom_call.1']
    #allocation7 [shape = 'u8[65536]{0}', space=vmem, size = 0x10000, scoped, tag = 'output window, operand 0, single buffered']
    %8 = vsyncpa [#allocation3], 0
    %9 = vsyncpa [#allocation6], 0
    %10 = vsyncpa [#allocation4], 0
    // Predicated region
    $region2: #{tpu_custom_call.1} parent=1 // pred_check
      _
    $region3: #{tpu_custom_call.1} parent=1 // pred_check_branch
      %12 = sbr.rel (0) target = $region5
    $region4: #{tpu_custom_call.1} parent=1 // pred_region
      %s14 = ssub.s32 1024, 1024
      %15 = vsyncadd [#allocation3], %s14
      %s16 = sshll.u32 [#allocation2], 4
      %s17 = int_to_ptr.vmem [resolvable:$true] %s16
      %22 = dma.hbm_to_vmem [thread:$0]  %s0, 1024, %s17, [#allocation3], 128, 128, 8
    $region5: #{tpu_custom_call.1} parent=1 // pred_fallthru
      _
    // Predicated region
    $region6: #{tpu_custom_call.1} parent=1 // pred_check
      _
    $region7: #{tpu_custom_call.1} parent=1 // pred_check_branch
      %24 = sbr.rel (0) target = $region9
    $region8: #{tpu_custom_call.1} parent=1 // pred_region
      %s26 = ssub.s32 4096, 4096
      %27 = vsyncadd [#allocation6], %s26
      %s28 = sshll.u32 [#allocation5], 4
      %s29 = int_to_ptr.vmem [resolvable:$true] %s28
      %34 = dma.hbm_to_vmem [thread:$0]  %s1, 4096, %s29, [#allocation6], 256, 256, 16
    $region9: #{tpu_custom_call.1} parent=1 // pred_fallthru
      _
    // Predicated region
    $region10: #{tpu_custom_call.1} parent=1 // pred_check
      _
    $region11: #{tpu_custom_call.1} parent=1 // pred_check_branch
      %36 = sbr.rel (0) target = $region13
    $region12: #{tpu_custom_call.1} parent=1 // pred_region
      _
    $region13: #{tpu_custom_call.1} parent=1 // pred_fallthru
      _
    // Predicated region
    $region14: #{tpu_custom_call.1} parent=1 // pred_check
      _
    $region15: #{tpu_custom_call.1} parent=1 // pred_check_branch
      %38 = sbr.rel (0) target = $region17
    $region16: #{tpu_custom_call.1} parent=1 // pred_region
      %39 = dma.done [#allocation3], 1024
    $region17: #{tpu_custom_call.1} parent=1 // pred_fallthru
      _
    // Predicated region
    $region18: #{tpu_custom_call.1} parent=1 // pred_check
      _
    $region19: #{tpu_custom_call.1} parent=1 // pred_check_branch
      %41 = sbr.rel (0) target = $region21
    $region20: #{tpu_custom_call.1} parent=1 // pred_region
      %42 = dma.done [#allocation6], 4096
    $region21: #{tpu_custom_call.1} parent=1 // pred_fallthru
      _
    %v43 = vld [vmem:[#allocation2] sm:$0xff]
    %v44 = vld [vmem:[#allocation2 + $0x8] sm:$0xff]
    %v45 = vld [vmem:[#allocation2 + $0x10] sm:$0xff]
    %v46 = vld [vmem:[#allocation2 + $0x18] sm:$0xff]
    %v47 = vld [vmem:[#allocation2 + $0x20] sm:$0xff]
    %v48 = vld [vmem:[#allocation2 + $0x28] sm:$0xff]
    %v49 = vld [vmem:[#allocation2 + $0x30] sm:$0xff]
    %v50 = vld [vmem:[#allocation2 + $0x38] sm:$0xff]
    %v51 = vld [vmem:[#allocation5] sm:$0xff]
    %v52 = vld [vmem:[#allocation5 + $0x8] sm:$0xff]
    %v53 = vld [vmem:[#allocation5 + $0x10] sm:$0xff]
    %v54 = vld [vmem:[#allocation5 + $0x18] sm:$0xff]
    %v55 = vld [vmem:[#allocation5 + $0x20] sm:$0xff]
    %v56 = vld [vmem:[#allocation5 + $0x28] sm:$0xff]
    %v57 = vld [vmem:[#allocation5 + $0x30] sm:$0xff]
    %v58 = vld [vmem:[#allocation5 + $0x38] sm:$0xff]
    %v59 = vld [vmem:[#allocation5 + $0x40] sm:$0xff]
    %v60 = vld [vmem:[#allocation5 + $0x48] sm:$0xff]
    %v61 = vld [vmem:[#allocation5 + $0x50] sm:$0xff]
    %v62 = vld [vmem:[#allocation5 + $0x58] sm:$0xff]
    %v63 = vld [vmem:[#allocation5 + $0x60] sm:$0xff]
    %v64 = vld [vmem:[#allocation5 + $0x68] sm:$0xff]
    %v65 = vld [vmem:[#allocation5 + $0x70] sm:$0xff]
    %v66 = vld [vmem:[#allocation5 + $0x78] sm:$0xff]
    %v67 = vld [vmem:[#allocation5 + $0x80] sm:$0xff]
    %v68 = vld [vmem:[#allocation5 + $0x88] sm:$0xff]
    %v69 = vld [vmem:[#allocation5 + $0x90] sm:$0xff]
    %v70 = vld [vmem:[#allocation5 + $0x98] sm:$0xff]
    %v71 = vld [vmem:[#allocation5 + $0xa0] sm:$0xff]
    %v72 = vld [vmem:[#allocation5 + $0xa8] sm:$0xff]
    %v73 = vld [vmem:[#allocation5 + $0xb0] sm:$0xff]
    %v74 = vld [vmem:[#allocation5 + $0xb8] sm:$0xff]
    %v75 = vld [vmem:[#allocation5 + $0xc0] sm:$0xff]
    %v76 = vld [vmem:[#allocation5 + $0xc8] sm:$0xff]
    %v77 = vld [vmem:[#allocation5 + $0xd0] sm:$0xff]
    %v78 = vld [vmem:[#allocation5 + $0xd8] sm:$0xff]
    %v79 = vld [vmem:[#allocation5 + $0xe0] sm:$0xff]
    %v80 = vld [vmem:[#allocation5 + $0xe8] sm:$0xff]
    %v81 = vld [vmem:[#allocation5 + $0xf0] sm:$0xff]
    %v82 = vld [vmem:[#allocation5 + $0xf8] sm:$0xff]
    %v83 = vld [vmem:[%s2] sm:$0x3]
    %v85 = vlaneseq
    %v86 = vshrl.u32 %v85, 7
    %v87 = vsub.s32 0, %v86
    %v88 = vrot.slane %v83, %v87
    %v89 = vlaneseq
    %v90 = vshrl.u32 %v89, 7
    %v91 = vsub.s32 1, %v90
    %v92 = vrot.slane %v83, %v91
    %95 = vmatprep.subr.mxu0 %v52
    %96 = vmatpush1.msra.mxu0 %v51
    %97 = vmatprep.subr.mxu0 %v54
    %98 = vmatpush1.msra.mxu0 %v53
    %99 = vmatprep.subr.mxu0 %v56
    %100 = vmatpush1.msra.mxu0 %v55
    %101 = vmatprep.subr.mxu0 %v58
    %102 = vmatpush1.msra.mxu0 %v57
    %103 = vmatprep.subr.mxu0 %v60
    %104 = vmatpush1.msra.mxu0 %v59
    %105 = vmatprep.subr.mxu0 %v62
    %106 = vmatpush1.msra.mxu0 %v61
    %107 = vmatprep.subr.mxu0 %v64
    %108 = vmatpush1.msra.mxu0 %v63
    %109 = vmatprep.subr.mxu0 %v66
    %110 = vmatpush1.msra.mxu0 %v65
    %111 = vmatprep.subr.mxu0 %v68
    %112 = vmatpush1.msra.mxu0 %v67
    %113 = vmatprep.subr.mxu0 %v70
    %114 = vmatpush1.msra.mxu0 %v69
    %115 = vmatprep.subr.mxu0 %v72
    %116 = vmatpush1.msra.mxu0 %v71
    %117 = vmatprep.subr.mxu0 %v74
    %118 = vmatpush1.msra.mxu0 %v73
    %119 = vmatprep.subr.mxu0 %v76
    %120 = vmatpush1.msra.mxu0 %v75
    %121 = vmatprep.subr.mxu0 %v78
    %122 = vmatpush1.msra.mxu0 %v77
    %123 = vmatprep.subr.mxu0 %v80
    %124 = vmatpush1.msra.mxu0 %v79
    %125 = vmatprep.subr.mxu0 %v82
    %126 = vmatpush1.msra.mxu0 %v81
    %127 = vmatprep.subr.mxu0 0.0
    %128 = vmatpush1.msra.mxu0 0.0
    %129 = vmatprep.subr.mxu0 0.0
    %130 = vmatpush1.msra.mxu0 0.0
    %131 = vmatprep.subr.mxu0 0.0
    %132 = vmatpush1.msra.mxu0 0.0
    %133 = vmatprep.subr.mxu0 0.0
    %134 = vmatpush1.msra.mxu0 0.0
    %135 = vmatprep.subr.mxu0 0.0
    %136 = vmatpush1.msra.mxu0 0.0
    %137 = vmatprep.subr.mxu0 0.0
    %138 = vmatpush1.msra.mxu0 0.0
    %139 = vmatprep.subr.mxu0 0.0
    %140 = vmatpush1.msra.mxu0 0.0
    %141 = vmatprep.subr.mxu0 0.0
    %142 = vmatpush1.msra.mxu0 0.0
    %143 = vmatprep.subr.mxu0 0.0
    %144 = vmatpush1.msra.mxu0 0.0
    %145 = vmatprep.subr.mxu0 0.0
    %146 = vmatpush1.msra.mxu0 0.0
    %147 = vmatprep.subr.mxu0 0.0
    %148 = vmatpush1.msra.mxu0 0.0
    %149 = vmatprep.subr.mxu0 0.0
    %150 = vmatpush1.msra.mxu0 0.0
    %151 = vmatprep.subr.mxu0 0.0
    %152 = vmatpush1.msra.mxu0 0.0
    %153 = vmatprep.subr.mxu0 0.0
    %154 = vmatpush1.msra.mxu0 0.0
    %155 = vmatprep.subr.mxu0 0.0
    %156 = vmatpush1.msra.mxu0 0.0
    %157 = vmatprep.subr.mxu0 0.0
    %158 = vmatpush1.msra.mxu0 0.0
    %159 = vmatprep.mubr.f32.mxu0 0.0
    %160 = vmatmul.mubr.f32.gmra.mrb[0].mxu0 %v43
    %v161 = vpop.f32.mrb[0].mxu0
    %v162 = vadd.f32 %v88, %v161
    %v163 = vpop.f32.mrb[0].mxu0
    %v164 = vadd.f32 %v92, %v163
    %165 = vmatprep.mubr.f32.mxu0 0.0
    %166 = vmatmul.mubr.f32.gmra.mrb[0].mxu0 %v44
    %v167 = vpop.f32.mrb[0].mxu0
    %v168 = vadd.f32 %v88, %v167
    %v169 = vpop.f32.mrb[0].mxu0
    %v170 = vadd.f32 %v92, %v169
    %171 = vmatprep.mubr.f32.mxu0 0.0
    %172 = vmatmul.mubr.f32.gmra.mrb[0].mxu0 %v45
    %v173 = vpop.f32.mrb[0].mxu0
    %v174 = vadd.f32 %v88, %v173
    %v175 = vpop.f32.mrb[0].mxu0
    %v176 = vadd.f32 %v92, %v175
    %177 = vmatprep.mubr.f32.mxu0 0.0
    %178 = vmatmul.mubr.f32.gmra.mrb[0].mxu0 %v46
    %v179 = vpop.f32.mrb[0].mxu0
    %v180 = vadd.f32 %v88, %v179
    %v181 = vpop.f32.mrb[0].mxu0
    %v182 = vadd.f32 %v92, %v181
    %183 = vmatprep.mubr.f32.mxu0 0.0
    %184 = vmatmul.mubr.f32.gmra.mrb[0].mxu0 %v47
    %v185 = vpop.f32.mrb[0].mxu0
    %v186 = vadd.f32 %v88, %v185
    %v187 = vpop.f32.mrb[0].mxu0
    %v188 = vadd.f32 %v92, %v187
    %189 = vmatprep.mubr.f32.mxu0 0.0
    %190 = vmatmul.mubr.f32.gmra.mrb[0].mxu0 %v48
    %v191 = vpop.f32.mrb[0].mxu0
    %v192 = vadd.f32 %v88, %v191
    %v193 = vpop.f32.mrb[0].mxu0
    %v194 = vadd.f32 %v92, %v193
    %195 = vmatprep.mubr.f32.mxu0 0.0
    %196 = vmatmul.mubr.f32.gmra.mrb[0].mxu0 %v49
    %v197 = vpop.f32.mrb[0].mxu0
    %v198 = vadd.f32 %v88, %v197
    %v199 = vpop.f32.mrb[0].mxu0
    %v200 = vadd.f32 %v92, %v199
    %201 = vmatprep.mubr.f32.mxu0 0.0
    %202 = vmatmul.mubr.f32.gmra.mrb[0].mxu0 %v50
    %v203 = vpop.f32.mrb[0].mxu0
    %v204 = vadd.f32 %v88, %v203
    %v205 = vpop.f32.mrb[0].mxu0
    %v206 = vadd.f32 %v92, %v205
    %207 = vdwg.mxu0
    %v208 = vand.u32 2147483647, %v162
    %vm209 = vcmp.le.f32.partialorder %v208, 0.7853982
    %vm210 = vcmp.lt.s32.totalorder %v162, 0
    %v211 = vand.u32 %v162, 2139095040
    %v212 = vshrl.u32 %v211, 23
    %v213 = vsub.s32 %v212, 127
    %v214 = vand.u32 2147483647, %v162
    %v215 = vand.u32 %v214, 8388607
    %v216 = vor.u32 %v215, 8388608
    %v217 = vsub.s32 0, %v216
    %v218 = vadd.s32 %v213, 1
    %vm219 = vcmp.gt.s32.totalorder %v218, 0
    %v220 = vsel %vm219, %v218, 0
    %v221 = vshrl.u32 %v220, 5
    %v222 = vand.u32 %v220, 31
    %v223 = vsub.s32 32, %v222
    %v224 = vshrl.u32 683565275, %v223
    %v225 = vshll.u32 683565275, %v222
    %v226 = vshrl.u32 2475754826, %v223
    %v227 = vor.u32 %v225, %v226
    %v228 = vshll.u32 2475754826, %v222
    %v229 = vshrl.u32 2131351028, %v223
    %v230 = vor.u32 %v228, %v229
    %v231 = vshll.u32 2131351028, %v222
    %v232 = vshrl.u32 2102212464, %v223
    %v233 = vor.u32 %v231, %v232
    %v234 = vshll.u32 2102212464, %v222
    %v235 = vshrl.u32 920167782, %v223
    %v236 = vor.u32 %v234, %v235
    %v237 = vshll.u32 920167782, %v222
    %v238 = vshrl.u32 1326507024, %v223
    %v239 = vor.u32 %v237, %v238
    %vm240 = vcmp.lt.s32.totalorder %v221, 1
    %vm241 = vcmp.lt.s32.totalorder %v221, 2
    %vm242 = vcmp.lt.s32.totalorder %v221, 3
    %vm243 = vcmp.lt.s32.totalorder %v221, 4
    %v244 = vsel %vm240, %v224, %v227
    %v245 = vsel %vm243, %v233, 2102212464
    %v246 = vsel %vm242, %v230, %v245
    %v247 = vsel %vm241, %v244, %v246
    %v248 = vsel %vm240, %v227, %v230
    %v249 = vsel %vm243, %v236, 920167782
    %v250 = vsel %vm242, %v233, %v249
    %v251 = vsel %vm241, %v248, %v250
    %v252 = vsel %vm240, %v230, %v233
    %v253 = vsel %vm243, %v239, 1326507024
    %v254 = vsel %vm242, %v236, %v253
    %v255 = vsel %vm241, %v252, %v254
    %v256 = vshll.u32 %v216, 8
    %v257 = vmul.u32.u64.compose %v256, %v255
    %v258 = vextract.low.u32 %v257
    %v259 = vextract.high.u32 %v257
    %v260 = vmul.u32.u64.compose %v256, %v251
    %v261 = vextract.low.u32 %v260
    %v262 = vextract.high.u32 %v260
    %v263 = vmul.u32 %v256, %v247
    %v264 = vadd.s32 %v259, %v261
    %vm265 = vc.u32 %v259, %v261
    %v266 = vadd.s32 %v262, 1
    %v267 = vsel %vm265, %v266, %v262
    %v268 = vadd.s32 %v263, %v267
    %v269 = vadd.s32 %v268, 536870912
    %v270 = vshrl.u32 %v269, 30
    %v271 = vshll.u32 %v270, 30
    %v272 = vsub.s32 %v268, %v271
    %vm273 = vcmp.lt.s32.totalorder %v272, 0
    %v274 = vsub.s32 0, %v272
    %v275 = vsel %vm273, %v274, %v272
    %v276 = vclz %v275
    %v277 = vsub.s32 %v276, 2
    %vm278 = vcmp.gt.s32.totalorder 0, %v277
    %v279 = vsel %vm278, 0, %v277
    %v280 = vsub.s32 32, %v279
    %v281 = vshll.u32 %v272, %v279
    %v282 = vshrl.u32 %v264, %v280
    %v283 = vor.u32 %v281, %v282
    %v284 = vsub.s32 4294967266, %v279
    %v285 = vadd.s32 %v284, 127
    %v286 = vshll.u32 %v285, 23
    %v287 = vor.u32 4788187, %v286
    %v288 = vand.u32 2147483647, %v287
    %v290 = vcvt.s32.f32 %v283
    %v291 = vmul.f32 %v290, %v288
    %v292 = vxor.u32 %v291, 2147483648
    %v293 = vsel %vm210, %v292, %v291
    %v294 = vsub.s32 4, %v270
    %v295 = vsel %vm210, %v294, %v270
    %v296 = vsel %vm209, %v162, %v293
    %v297 = vsel %vm209, 0, %v295
    %v298 = vcosq.f32.pop %v296
    %v299 = vsinq.f32.pop %v296
    %vm300 = vweird.f32 %v162
    %v301 = vadd.s32 %v297, 3
    %v302 = vand.u32 %v301, 3
    %vm303 = vcmp.lt.s32.totalorder %v302, 2
    %vm304 = vcmp.eq.s32.totalorder %v302, 0
    %v305 = vxor.u32 %v299, 2147483648
    %v306 = vsel %vm304, %v298, %v305
    %vm307 = vcmp.eq.s32.totalorder %v302, 2
    %v308 = vxor.u32 %v298, 2147483648
    %v309 = vsel %vm307, %v308, %v299
    %v310 = vsel %vm303, %v306, %v309
    %v311 = vsel %vm300, nan, %v310
    %v312 = vand.u32 2147483647, %v164
    %vm313 = vcmp.le.f32.partialorder %v312, 0.7853982
    %vm314 = vcmp.lt.s32.totalorder %v164, 0
    %v315 = vand.u32 %v164, 2139095040
    %v316 = vshrl.u32 %v315, 23
    %v317 = vsub.s32 %v316, 127
    %v318 = vand.u32 2147483647, %v164
    %v319 = vand.u32 %v318, 8388607
    %v320 = vor.u32 %v319, 8388608
    %v321 = vsub.s32 0, %v320
    %v322 = vadd.s32 %v317, 1
    %vm323 = vcmp.gt.s32.totalorder %v322, 0
    %v324 = vsel %vm323, %v322, 0
    %v325 = vshrl.u32 %v324, 5
    %v326 = vand.u32 %v324, 31
    %v327 = vsub.s32 32, %v326
    %v328 = vshrl.u32 683565275, %v327
    %v329 = vshll.u32 683565275, %v326
    %v330 = vshrl.u32 2475754826, %v327
    %v331 = vor.u32 %v329, %v330
    %v332 = vshll.u32 2475754826, %v326
    %v333 = vshrl.u32 2131351028, %v327
    %v334 = vor.u32 %v332, %v333
    %v335 = vshll.u32 2131351028, %v326
    %v336 = vshrl.u32 2102212464, %v327
    %v337 = vor.u32 %v335, %v336
    %v338 = vshll.u32 2102212464, %v326
    %v339 = vshrl.u32 920167782, %v327
    %v340 = vor.u32 %v338, %v339
    %v341 = vshll.u32 920167782, %v326
    %v342 = vshrl.u32 1326507024, %v327
    %v343 = vor.u32 %v341, %v342
    %vm344 = vcmp.lt.s32.totalorder %v325, 1
    %vm345 = vcmp.lt.s32.totalorder %v325, 2
    %vm346 = vcmp.lt.s32.totalorder %v325, 3
    %vm347 = vcmp.lt.s32.totalorder %v325, 4
    %v348 = vsel %vm344, %v328, %v331
    %v349 = vsel %vm347, %v337, 2102212464
    %v350 = vsel %vm346, %v334, %v349
    %v351 = vsel %vm345, %v348, %v350
    %v352 = vsel %vm344, %v331, %v334
    %v353 = vsel %vm347, %v340, 920167782
    %v354 = vsel %vm346, %v337, %v353
    %v355 = vsel %vm345, %v352, %v354
    %v356 = vsel %vm344, %v334, %v337
    %v357 = vsel %vm347, %v343, 1326507024
    %v358 = vsel %vm346, %v340, %v357
    %v359 = vsel %vm345, %v356, %v358
    %v360 = vshll.u32 %v320, 8
    %v361 = vmul.u32.u64.compose %v360, %v359
    %v362 = vextract.low.u32 %v361
    %v363 = vextract.high.u32 %v361
    %v364 = vmul.u32.u64.compose %v360, %v355
    %v365 = vextract.low.u32 %v364
    %v366 = vextract.high.u32 %v364
    %v367 = vmul.u32 %v360, %v351
    %v368 = vadd.s32 %v363, %v365
    %vm369 = vc.u32 %v363, %v365
    %v370 = vadd.s32 %v366, 1
    %v371 = vsel %vm369, %v370, %v366
    %v372 = vadd.s32 %v367, %v371
    %v373 = vadd.s32 %v372, 536870912
    %v374 = vshrl.u32 %v373, 30
    %v375 = vshll.u32 %v374, 30
    %v376 = vsub.s32 %v372, %v375
    %vm377 = vcmp.lt.s32.totalorder %v376, 0
    %v378 = vsub.s32 0, %v376
    %v379 = vsel %vm377, %v378, %v376
    %v380 = vclz %v379
    %v381 = vsub.s32 %v380, 2
    %vm382 = vcmp.gt.s32.totalorder 0, %v381
    %v383 = vsel %vm382, 0, %v381
    %v384 = vsub.s32 32, %v383
    %v385 = vshll.u32 %v376, %v383
    %v386 = vshrl.u32 %v368, %v384
    %v387 = vor.u32 %v385, %v386
    %v388 = vsub.s32 4294967266, %v383
    %v389 = vadd.s32 %v388, 127
    %v390 = vshll.u32 %v389, 23
    %v391 = vor.u32 4788187, %v390
    %v392 = vand.u32 2147483647, %v391
    %v394 = vcvt.s32.f32 %v387
    %v395 = vmul.f32 %v394, %v392
    %v396 = vxor.u32 %v395, 2147483648
    %v397 = vsel %vm314, %v396, %v395
    %v398 = vsub.s32 4, %v374
    %v399 = vsel %vm314, %v398, %v374
    %v400 = vsel %vm313, %v164, %v397
    %v401 = vsel %vm313, 0, %v399
    %v402 = vcosq.f32.pop %v400
    %v403 = vsinq.f32.pop %v400
    %vm404 = vweird.f32 %v164
    %v405 = vadd.s32 %v401, 3
    %v406 = vand.u32 %v405, 3
    %vm407 = vcmp.lt.s32.totalorder %v406, 2
    %vm408 = vcmp.eq.s32.totalorder %v406, 0
    %v409 = vxor.u32 %v403, 2147483648
    %v410 = vsel %vm408, %v402, %v409
    %vm411 = vcmp.eq.s32.totalorder %v406, 2
    %v412 = vxor.u32 %v402, 2147483648
    %v413 = vsel %vm411, %v412, %v403
    %v414 = vsel %vm407, %v410, %v413
    %v415 = vsel %vm404, nan, %v414
    %v416 = vand.u32 2147483647, %v168
    %vm417 = vcmp.le.f32.partialorder %v416, 0.7853982
    %vm418 = vcmp.lt.s32.totalorder %v168, 0
    %v419 = vand.u32 %v168, 2139095040
    %v420 = vshrl.u32 %v419, 23
    %v421 = vsub.s32 %v420, 127
    %v422 = vand.u32 2147483647, %v168
    %v423 = vand.u32 %v422, 8388607
    %v424 = vor.u32 %v423, 8388608
    %v425 = vsub.s32 0, %v424
    %v426 = vadd.s32 %v421, 1
    %vm427 = vcmp.gt.s32.totalorder %v426, 0
    %v428 = vsel %vm427, %v426, 0
    %v429 = vshrl.u32 %v428, 5
    %v430 = vand.u32 %v428, 31
    %v431 = vsub.s32 32, %v430
    %v432 = vshrl.u32 683565275, %v431
    %v433 = vshll.u32 683565275, %v430
    %v434 = vshrl.u32 2475754826, %v431
    %v435 = vor.u32 %v433, %v434
    %v436 = vshll.u32 2475754826, %v430
    %v437 = vshrl.u32 2131351028, %v431
    %v438 = vor.u32 %v436, %v437
    %v439 = vshll.u32 2131351028, %v430
    %v440 = vshrl.u32 2102212464, %v431
    %v441 = vor.u32 %v439, %v440
    %v442 = vshll.u32 2102212464, %v430
    %v443 = vshrl.u32 920167782, %v431
    %v444 = vor.u32 %v442, %v443
    %v445 = vshll.u32 920167782, %v430
    %v446 = vshrl.u32 1326507024, %v431
    %v447 = vor.u32 %v445, %v446
    %vm448 = vcmp.lt.s32.totalorder %v429, 1
    %vm449 = vcmp.lt.s32.totalorder %v429, 2
    %vm450 = vcmp.lt.s32.totalorder %v429, 3
    %vm451 = vcmp.lt.s32.totalorder %v429, 4
    %v452 = vsel %vm448, %v432, %v435
    %v453 = vsel %vm451, %v441, 2102212464
    %v454 = vsel %vm450, %v438, %v453
    %v455 = vsel %vm449, %v452, %v454
    %v456 = vsel %vm448, %v435, %v438
    %v457 = vsel %vm451, %v444, 920167782
    %v458 = vsel %vm450, %v441, %v457
    %v459 = vsel %vm449, %v456, %v458
    %v460 = vsel %vm448, %v438, %v441
    %v461 = vsel %vm451, %v447, 1326507024
    %v462 = vsel %vm450, %v444, %v461
    %v463 = vsel %vm449, %v460, %v462
    %v464 = vshll.u32 %v424, 8
    %v465 = vmul.u32.u64.compose %v464, %v463
    %v466 = vextract.low.u32 %v465
    %v467 = vextract.high.u32 %v465
    %v468 = vmul.u32.u64.compose %v464, %v459
    %v469 = vextract.low.u32 %v468
    %v470 = vextract.high.u32 %v468
    %v471 = vmul.u32 %v464, %v455
    %v472 = vadd.s32 %v467, %v469
    %vm473 = vc.u32 %v467, %v469
    %v474 = vadd.s32 %v470, 1
    %v475 = vsel %vm473, %v474, %v470
    %v476 = vadd.s32 %v471, %v475
    %v477 = vadd.s32 %v476, 536870912
    %v478 = vshrl.u32 %v477, 30
    %v479 = vshll.u32 %v478, 30
    %v480 = vsub.s32 %v476, %v479
    %vm481 = vcmp.lt.s32.totalorder %v480, 0
    %v482 = vsub.s32 0, %v480
    %v483 = vsel %vm481, %v482, %v480
    %v484 = vclz %v483
    %v485 = vsub.s32 %v484, 2
    %vm486 = vcmp.gt.s32.totalorder 0, %v485
    %v487 = vsel %vm486, 0, %v485
    %v488 = vsub.s32 32, %v487
    %v489 = vshll.u32 %v480, %v487
    %v490 = vshrl.u32 %v472, %v488
    %v491 = vor.u32 %v489, %v490
    %v492 = vsub.s32 4294967266, %v487
    %v493 = vadd.s32 %v492, 127
    %v494 = vshll.u32 %v493, 23
    %v495 = vor.u32 4788187, %v494
    %v496 = vand.u32 2147483647, %v495
    %v498 = vcvt.s32.f32 %v491
    %v499 = vmul.f32 %v498, %v496
    %v500 = vxor.u32 %v499, 2147483648
    %v501 = vsel %vm418, %v500, %v499
    %v502 = vsub.s32 4, %v478
    %v503 = vsel %vm418, %v502, %v478
    %v504 = vsel %vm417, %v168, %v501
    %v505 = vsel %vm417, 0, %v503
    %v506 = vcosq.f32.pop %v504
    %v507 = vsinq.f32.pop %v504
    %vm508 = vweird.f32 %v168
    %v509 = vadd.s32 %v505, 3
    %v510 = vand.u32 %v509, 3
    %vm511 = vcmp.lt.s32.totalorder %v510, 2
    %vm512 = vcmp.eq.s32.totalorder %v510, 0
    %v513 = vxor.u32 %v507, 2147483648
    %v514 = vsel %vm512, %v506, %v513
    %vm515 = vcmp.eq.s32.totalorder %v510, 2
    %v516 = vxor.u32 %v506, 2147483648
    %v517 = vsel %vm515, %v516, %v507
    %v518 = vsel %vm511, %v514, %v517
    %v519 = vsel %vm508, nan, %v518
    %v520 = vand.u32 2147483647, %v170
    %vm521 = vcmp.le.f32.partialorder %v520, 0.7853982
    %vm522 = vcmp.lt.s32.totalorder %v170, 0
    %v523 = vand.u32 %v170, 2139095040
    %v524 = vshrl.u32 %v523, 23
    %v525 = vsub.s32 %v524, 127
    %v526 = vand.u32 2147483647, %v170
    %v527 = vand.u32 %v526, 8388607
    %v528 = vor.u32 %v527, 8388608
    %v529 = vsub.s32 0, %v528
    %v530 = vadd.s32 %v525, 1
    %vm531 = vcmp.gt.s32.totalorder %v530, 0
    %v532 = vsel %vm531, %v530, 0
    %v533 = vshrl.u32 %v532, 5
    %v534 = vand.u32 %v532, 31
    %v535 = vsub.s32 32, %v534
    %v536 = vshrl.u32 683565275, %v535
    %v537 = vshll.u32 683565275, %v534
    %v538 = vshrl.u32 2475754826, %v535
    %v539 = vor.u32 %v537, %v538
    %v540 = vshll.u32 2475754826, %v534
    %v541 = vshrl.u32 2131351028, %v535
    %v542 = vor.u32 %v540, %v541
    %v543 = vshll.u32 2131351028, %v534
    %v544 = vshrl.u32 2102212464, %v535
    %v545 = vor.u32 %v543, %v544
    %v546 = vshll.u32 2102212464, %v534
    %v547 = vshrl.u32 920167782, %v535
    %v548 = vor.u32 %v546, %v547
    %v549 = vshll.u32 920167782, %v534
    %v550 = vshrl.u32 1326507024, %v535
    %v551 = vor.u32 %v549, %v550
    %vm552 = vcmp.lt.s32.totalorder %v533, 1
    %vm553 = vcmp.lt.s32.totalorder %v533, 2
    %vm554 = vcmp.lt.s32.totalorder %v533, 3
    %vm555 = vcmp.lt.s32.totalorder %v533, 4
    %v556 = vsel %vm552, %v536, %v539
    %v557 = vsel %vm555, %v545, 2102212464
    %v558 = vsel %vm554, %v542, %v557
    %v559 = vsel %vm553, %v556, %v558
    %v560 = vsel %vm552, %v539, %v542
    %v561 = vsel %vm555, %v548, 920167782
    %v562 = vsel %vm554, %v545, %v561
    %v563 = vsel %vm553, %v560, %v562
    %v564 = vsel %vm552, %v542, %v545
    %v565 = vsel %vm555, %v551, 1326507024
    %v566 = vsel %vm554, %v548, %v565
    %v567 = vsel %vm553, %v564, %v566
    %v568 = vshll.u32 %v528, 8
    %v569 = vmul.u32.u64.compose %v568, %v567
    %v570 = vextract.low.u32 %v569
    %v571 = vextract.high.u32 %v569
    %v572 = vmul.u32.u64.compose %v568, %v563
    %v573 = vextract.low.u32 %v572
    %v574 = vextract.high.u32 %v572
    %v575 = vmul.u32 %v568, %v559
    %v576 = vadd.s32 %v571, %v573
    %vm577 = vc.u32 %v571, %v573
    %v578 = vadd.s32 %v574, 1
    %v579 = vsel %vm577, %v578, %v574
    %v580 = vadd.s32 %v575, %v579
    %v581 = vadd.s32 %v580, 536870912
    %v582 = vshrl.u32 %v581, 30
    %v583 = vshll.u32 %v582, 30
    %v584 = vsub.s32 %v580, %v583
    %vm585 = vcmp.lt.s32.totalorder %v584, 0
    %v586 = vsub.s32 0, %v584
    %v587 = vsel %vm585, %v586, %v584
    %v588 = vclz %v587
    %v589 = vsub.s32 %v588, 2
    %vm590 = vcmp.gt.s32.totalorder 0, %v589
    %v591 = vsel %vm590, 0, %v589
    %v592 = vsub.s32 32, %v591
    %v593 = vshll.u32 %v584, %v591
    %v594 = vshrl.u32 %v576, %v592
    %v595 = vor.u32 %v593, %v594
    %v596 = vsub.s32 4294967266, %v591
    %v597 = vadd.s32 %v596, 127
    %v598 = vshll.u32 %v597, 23
    %v599 = vor.u32 4788187, %v598
    %v600 = vand.u32 2147483647, %v599
    %v602 = vcvt.s32.f32 %v595
    %v603 = vmul.f32 %v602, %v600
    %v604 = vxor.u32 %v603, 2147483648
    %v605 = vsel %vm522, %v604, %v603
    %v606 = vsub.s32 4, %v582
    %v607 = vsel %vm522, %v606, %v582
    %v608 = vsel %vm521, %v170, %v605
    %v609 = vsel %vm521, 0, %v607
    %v610 = vcosq.f32.pop %v608
    %v611 = vsinq.f32.pop %v608
    %vm612 = vweird.f32 %v170
    %v613 = vadd.s32 %v609, 3
    %v614 = vand.u32 %v613, 3
    %vm615 = vcmp.lt.s32.totalorder %v614, 2
    %vm616 = vcmp.eq.s32.totalorder %v614, 0
    %v617 = vxor.u32 %v611, 2147483648
    %v618 = vsel %vm616, %v610, %v617
    %vm619 = vcmp.eq.s32.totalorder %v614, 2
    %v620 = vxor.u32 %v610, 2147483648
    %v621 = vsel %vm619, %v620, %v611
    %v622 = vsel %vm615, %v618, %v621
    %v623 = vsel %vm612, nan, %v622
    %v624 = vand.u32 2147483647, %v174
    %vm625 = vcmp.le.f32.partialorder %v624, 0.7853982
    %vm626 = vcmp.lt.s32.totalorder %v174, 0
    %v627 = vand.u32 %v174, 2139095040
    %v628 = vshrl.u32 %v627, 23
    %v629 = vsub.s32 %v628, 127
    %v630 = vand.u32 2147483647, %v174
    %v631 = vand.u32 %v630, 8388607
    %v632 = vor.u32 %v631, 8388608
    %v633 = vsub.s32 0, %v632
    %v634 = vadd.s32 %v629, 1
    %vm635 = vcmp.gt.s32.totalorder %v634, 0
    %v636 = vsel %vm635, %v634, 0
    %v637 = vshrl.u32 %v636, 5
    %v638 = vand.u32 %v636, 31
    %v639 = vsub.s32 32, %v638
    %v640 = vshrl.u32 683565275, %v639
    %v641 = vshll.u32 683565275, %v638
    %v642 = vshrl.u32 2475754826, %v639
    %v643 = vor.u32 %v641, %v642
    %v644 = vshll.u32 2475754826, %v638
    %v645 = vshrl.u32 2131351028, %v639
    %v646 = vor.u32 %v644, %v645
    %v647 = vshll.u32 2131351028, %v638
    %v648 = vshrl.u32 2102212464, %v639
    %v649 = vor.u32 %v647, %v648
    %v650 = vshll.u32 2102212464, %v638
    %v651 = vshrl.u32 920167782, %v639
    %v652 = vor.u32 %v650, %v651
    %v653 = vshll.u32 920167782, %v638
    %v654 = vshrl.u32 1326507024, %v639
    %v655 = vor.u32 %v653, %v654
    %vm656 = vcmp.lt.s32.totalorder %v637, 1
    %vm657 = vcmp.lt.s32.totalorder %v637, 2
    %vm658 = vcmp.lt.s32.totalorder %v637, 3
    %vm659 = vcmp.lt.s32.totalorder %v637, 4
    %v660 = vsel %vm656, %v640, %v643
    %v661 = vsel %vm659, %v649, 2102212464
    %v662 = vsel %vm658, %v646, %v661
    %v663 = vsel %vm657, %v660, %v662
    %v664 = vsel %vm656, %v643, %v646
    %v665 = vsel %vm659, %v652, 920167782
    %v666 = vsel %vm658, %v649, %v665
    %v667 = vsel %vm657, %v664, %v666
    %v668 = vsel %vm656, %v646, %v649
    %v669 = vsel %vm659, %v655, 1326507024
    %v670 = vsel %vm658, %v652, %v669
    %v671 = vsel %vm657, %v668, %v670
    %v672 = vshll.u32 %v632, 8
    %v673 = vmul.u32.u64.compose %v672, %v671
    %v674 = vextract.low.u32 %v673
    %v675 = vextract.high.u32 %v673
    %v676 = vmul.u32.u64.compose %v672, %v667
    %v677 = vextract.low.u32 %v676
    %v678 = vextract.high.u32 %v676
    %v679 = vmul.u32 %v672, %v663
    %v680 = vadd.s32 %v675, %v677
    %vm681 = vc.u32 %v675, %v677
    %v682 = vadd.s32 %v678, 1
    %v683 = vsel %vm681, %v682, %v678
    %v684 = vadd.s32 %v679, %v683
    %v685 = vadd.s32 %v684, 536870912
    %v686 = vshrl.u32 %v685, 30
    %v687 = vshll.u32 %v686, 30
    %v688 = vsub.s32 %v684, %v687
    %vm689 = vcmp.lt.s32.totalorder %v688, 0
    %v690 = vsub.s32 0, %v688
    %v691 = vsel %vm689, %v690, %v688
    %v692 = vclz %v691
    %v693 = vsub.s32 %v692, 2
    %vm694 = vcmp.gt.s32.totalorder 0, %v693
    %v695 = vsel %vm694, 0, %v693
    %v696 = vsub.s32 32, %v695
    %v697 = vshll.u32 %v688, %v695
    %v698 = vshrl.u32 %v680, %v696
    %v699 = vor.u32 %v697, %v698
    %v700 = vsub.s32 4294967266, %v695
    %v701 = vadd.s32 %v700, 127
    %v702 = vshll.u32 %v701, 23
    %v703 = vor.u32 4788187, %v702
    %v704 = vand.u32 2147483647, %v703
    %v706 = vcvt.s32.f32 %v699
    %v707 = vmul.f32 %v706, %v704
    %v708 = vxor.u32 %v707, 2147483648
    %v709 = vsel %vm626, %v708, %v707
    %v710 = vsub.s32 4, %v686
    %v711 = vsel %vm626, %v710, %v686
    %v712 = vsel %vm625, %v174, %v709
    %v713 = vsel %vm625, 0, %v711
    %v714 = vcosq.f32.pop %v712
    %v715 = vsinq.f32.pop %v712
    %vm716 = vweird.f32 %v174
    %v717 = vadd.s32 %v713, 3
    %v718 = vand.u32 %v717, 3
    %vm719 = vcmp.lt.s32.totalorder %v718, 2
    %vm720 = vcmp.eq.s32.totalorder %v718, 0
    %v721 = vxor.u32 %v715, 2147483648
    %v722 = vsel %vm720, %v714, %v721
    %vm723 = vcmp.eq.s32.totalorder %v718, 2
    %v724 = vxor.u32 %v714, 2147483648
    %v725 = vsel %vm723, %v724, %v715
    %v726 = vsel %vm719, %v722, %v725
    %v727 = vsel %vm716, nan, %v726
    %v728 = vand.u32 2147483647, %v176
    %vm729 = vcmp.le.f32.partialorder %v728, 0.7853982
    %vm730 = vcmp.lt.s32.totalorder %v176, 0
    %v731 = vand.u32 %v176, 2139095040
    %v732 = vshrl.u32 %v731, 23
    %v733 = vsub.s32 %v732, 127
    %v734 = vand.u32 2147483647, %v176
    %v735 = vand.u32 %v734, 8388607
    %v736 = vor.u32 %v735, 8388608
    %v737 = vsub.s32 0, %v736
    %v738 = vadd.s32 %v733, 1
    %vm739 = vcmp.gt.s32.totalorder %v738, 0
    %v740 = vsel %vm739, %v738, 0
    %v741 = vshrl.u32 %v740, 5
    %v742 = vand.u32 %v740, 31
    %v743 = vsub.s32 32, %v742
    %v744 = vshrl.u32 683565275, %v743
    %v745 = vshll.u32 683565275, %v742
    %v746 = vshrl.u32 2475754826, %v743
    %v747 = vor.u32 %v745, %v746
    %v748 = vshll.u32 2475754826, %v742
    %v749 = vshrl.u32 2131351028, %v743
    %v750 = vor.u32 %v748, %v749
    %v751 = vshll.u32 2131351028, %v742
    %v752 = vshrl.u32 2102212464, %v743
    %v753 = vor.u32 %v751, %v752
    %v754 = vshll.u32 2102212464, %v742
    %v755 = vshrl.u32 920167782, %v743
    %v756 = vor.u32 %v754, %v755
    %v757 = vshll.u32 920167782, %v742
    %v758 = vshrl.u32 1326507024, %v743
    %v759 = vor.u32 %v757, %v758
    %vm760 = vcmp.lt.s32.totalorder %v741, 1
    %vm761 = vcmp.lt.s32.totalorder %v741, 2
    %vm762 = vcmp.lt.s32.totalorder %v741, 3
    %vm763 = vcmp.lt.s32.totalorder %v741, 4
    %v764 = vsel %vm760, %v744, %v747
    %v765 = vsel %vm763, %v753, 2102212464
    %v766 = vsel %vm762, %v750, %v765
    %v767 = vsel %vm761, %v764, %v766
    %v768 = vsel %vm760, %v747, %v750
    %v769 = vsel %vm763, %v756, 920167782
    %v770 = vsel %vm762, %v753, %v769
    %v771 = vsel %vm761, %v768, %v770
    %v772 = vsel %vm760, %v750, %v753
    %v773 = vsel %vm763, %v759, 1326507024
    %v774 = vsel %vm762, %v756, %v773
    %v775 = vsel %vm761, %v772, %v774
    %v776 = vshll.u32 %v736, 8
    %v777 = vmul.u32.u64.compose %v776, %v775
    %v778 = vextract.low.u32 %v777
    %v779 = vextract.high.u32 %v777
    %v780 = vmul.u32.u64.compose %v776, %v771
    %v781 = vextract.low.u32 %v780
    %v782 = vextract.high.u32 %v780
    %v783 = vmul.u32 %v776, %v767
    %v784 = vadd.s32 %v779, %v781
    %vm785 = vc.u32 %v779, %v781
    %v786 = vadd.s32 %v782, 1
    %v787 = vsel %vm785, %v786, %v782
    %v788 = vadd.s32 %v783, %v787
    %v789 = vadd.s32 %v788, 536870912
    %v790 = vshrl.u32 %v789, 30
    %v791 = vshll.u32 %v790, 30
    %v792 = vsub.s32 %v788, %v791
    %vm793 = vcmp.lt.s32.totalorder %v792, 0
    %v794 = vsub.s32 0, %v792
    %v795 = vsel %vm793, %v794, %v792
    %v796 = vclz %v795
    %v797 = vsub.s32 %v796, 2
    %vm798 = vcmp.gt.s32.totalorder 0, %v797
    %v799 = vsel %vm798, 0, %v797
    %v800 = vsub.s32 32, %v799
    %v801 = vshll.u32 %v792, %v799
    %v802 = vshrl.u32 %v784, %v800
    %v803 = vor.u32 %v801, %v802
    %v804 = vsub.s32 4294967266, %v799
    %v805 = vadd.s32 %v804, 127
    %v806 = vshll.u32 %v805, 23
    %v807 = vor.u32 4788187, %v806
    %v808 = vand.u32 2147483647, %v807
    %v810 = vcvt.s32.f32 %v803
    %v811 = vmul.f32 %v810, %v808
    %v812 = vxor.u32 %v811, 2147483648
    %v813 = vsel %vm730, %v812, %v811
    %v814 = vsub.s32 4, %v790
    %v815 = vsel %vm730, %v814, %v790
    %v816 = vsel %vm729, %v176, %v813
    %v817 = vsel %vm729, 0, %v815
    %v818 = vcosq.f32.pop %v816
    %v819 = vsinq.f32.pop %v816
    %vm820 = vweird.f32 %v176
    %v821 = vadd.s32 %v817, 3
    %v822 = vand.u32 %v821, 3
    %vm823 = vcmp.lt.s32.totalorder %v822, 2
    %vm824 = vcmp.eq.s32.totalorder %v822, 0
    %v825 = vxor.u32 %v819, 2147483648
    %v826 = vsel %vm824, %v818, %v825
    %vm827 = vcmp.eq.s32.totalorder %v822, 2
    %v828 = vxor.u32 %v818, 2147483648
    %v829 = vsel %vm827, %v828, %v819
    %v830 = vsel %vm823, %v826, %v829
    %v831 = vsel %vm820, nan, %v830
    %v832 = vand.u32 2147483647, %v180
    %vm833 = vcmp.le.f32.partialorder %v832, 0.7853982
    %vm834 = vcmp.lt.s32.totalorder %v180, 0
    %v835 = vand.u32 %v180, 2139095040
    %v836 = vshrl.u32 %v835, 23
    %v837 = vsub.s32 %v836, 127
    %v838 = vand.u32 2147483647, %v180
    %v839 = vand.u32 %v838, 8388607
    %v840 = vor.u32 %v839, 8388608
    %v841 = vsub.s32 0, %v840
    %v842 = vadd.s32 %v837, 1
    %vm843 = vcmp.gt.s32.totalorder %v842, 0
    %v844 = vsel %vm843, %v842, 0
    %v845 = vshrl.u32 %v844, 5
    %v846 = vand.u32 %v844, 31
    %v847 = vsub.s32 32, %v846
    %v848 = vshrl.u32 683565275, %v847
    %v849 = vshll.u32 683565275, %v846
    %v850 = vshrl.u32 2475754826, %v847
    %v851 = vor.u32 %v849, %v850
    %v852 = vshll.u32 2475754826, %v846
    %v853 = vshrl.u32 2131351028, %v847
    %v854 = vor.u32 %v852, %v853
    %v855 = vshll.u32 2131351028, %v846
    %v856 = vshrl.u32 2102212464, %v847
    %v857 = vor.u32 %v855, %v856
    %v858 = vshll.u32 2102212464, %v846
    %v859 = vshrl.u32 920167782, %v847
    %v860 = vor.u32 %v858, %v859
    %v861 = vshll.u32 920167782, %v846
    %v862 = vshrl.u32 1326507024, %v847
    %v863 = vor.u32 %v861, %v862
    %vm864 = vcmp.lt.s32.totalorder %v845, 1
    %vm865 = vcmp.lt.s32.totalorder %v845, 2
    %vm866 = vcmp.lt.s32.totalorder %v845, 3
    %vm867 = vcmp.lt.s32.totalorder %v845, 4
    %v868 = vsel %vm864, %v848, %v851
    %v869 = vsel %vm867, %v857, 2102212464
    %v870 = vsel %vm866, %v854, %v869
    %v871 = vsel %vm865, %v868, %v870
    %v872 = vsel %vm864, %v851, %v854
    %v873 = vsel %vm867, %v860, 920167782
    %v874 = vsel %vm866, %v857, %v873
    %v875 = vsel %vm865, %v872, %v874
    %v876 = vsel %vm864, %v854, %v857
    %v877 = vsel %vm867, %v863, 1326507024
    %v878 = vsel %vm866, %v860, %v877
    %v879 = vsel %vm865, %v876, %v878
    %v880 = vshll.u32 %v840, 8
    %v881 = vmul.u32.u64.compose %v880, %v879
    %v882 = vextract.low.u32 %v881
    %v883 = vextract.high.u32 %v881
    %v884 = vmul.u32.u64.compose %v880, %v875
    %v885 = vextract.low.u32 %v884
    %v886 = vextract.high.u32 %v884
    %v887 = vmul.u32 %v880, %v871
    %v888 = vadd.s32 %v883, %v885
    %vm889 = vc.u32 %v883, %v885
    %v890 = vadd.s32 %v886, 1
    %v891 = vsel %vm889, %v890, %v886
    %v892 = vadd.s32 %v887, %v891
    %v893 = vadd.s32 %v892, 536870912
    %v894 = vshrl.u32 %v893, 30
    %v895 = vshll.u32 %v894, 30
    %v896 = vsub.s32 %v892, %v895
    %vm897 = vcmp.lt.s32.totalorder %v896, 0
    %v898 = vsub.s32 0, %v896
    %v899 = vsel %vm897, %v898, %v896
    %v900 = vclz %v899
    %v901 = vsub.s32 %v900, 2
    %vm902 = vcmp.gt.s32.totalorder 0, %v901
    %v903 = vsel %vm902, 0, %v901
    %v904 = vsub.s32 32, %v903
    %v905 = vshll.u32 %v896, %v903
    %v906 = vshrl.u32 %v888, %v904
    %v907 = vor.u32 %v905, %v906
    %v908 = vsub.s32 4294967266, %v903
    %v909 = vadd.s32 %v908, 127
    %v910 = vshll.u32 %v909, 23
    %v911 = vor.u32 4788187, %v910
    %v912 = vand.u32 2147483647, %v911
    %v914 = vcvt.s32.f32 %v907
    %v915 = vmul.f32 %v914, %v912
    %v916 = vxor.u32 %v915, 2147483648
    %v917 = vsel %vm834, %v916, %v915
    %v918 = vsub.s32 4, %v894
    %v919 = vsel %vm834, %v918, %v894
    %v920 = vsel %vm833, %v180, %v917
    %v921 = vsel %vm833, 0, %v919
    %v922 = vcosq.f32.pop %v920
    %v923 = vsinq.f32.pop %v920
    %vm924 = vweird.f32 %v180
    %v925 = vadd.s32 %v921, 3
    %v926 = vand.u32 %v925, 3
    %vm927 = vcmp.lt.s32.totalorder %v926, 2
    %vm928 = vcmp.eq.s32.totalorder %v926, 0
    %v929 = vxor.u32 %v923, 2147483648
    %v930 = vsel %vm928, %v922, %v929
    %vm931 = vcmp.eq.s32.totalorder %v926, 2
    %v932 = vxor.u32 %v922, 2147483648
    %v933 = vsel %vm931, %v932, %v923
    %v934 = vsel %vm927, %v930, %v933
    %v935 = vsel %vm924, nan, %v934
    %v936 = vand.u32 2147483647, %v182
    %vm937 = vcmp.le.f32.partialorder %v936, 0.7853982
    %vm938 = vcmp.lt.s32.totalorder %v182, 0
    %v939 = vand.u32 %v182, 2139095040
    %v940 = vshrl.u32 %v939, 23
    %v941 = vsub.s32 %v940, 127
    %v942 = vand.u32 2147483647, %v182
    %v943 = vand.u32 %v942, 8388607
    %v944 = vor.u32 %v943, 8388608
    %v945 = vsub.s32 0, %v944
    %v946 = vadd.s32 %v941, 1
    %vm947 = vcmp.gt.s32.totalorder %v946, 0
    %v948 = vsel %vm947, %v946, 0
    %v949 = vshrl.u32 %v948, 5
    %v950 = vand.u32 %v948, 31
    %v951 = vsub.s32 32, %v950
    %v952 = vshrl.u32 683565275, %v951
    %v953 = vshll.u32 683565275, %v950
    %v954 = vshrl.u32 2475754826, %v951
    %v955 = vor.u32 %v953, %v954
    %v956 = vshll.u32 2475754826, %v950
    %v957 = vshrl.u32 2131351028, %v951
    %v958 = vor.u32 %v956, %v957
    %v959 = vshll.u32 2131351028, %v950
    %v960 = vshrl.u32 2102212464, %v951
    %v961 = vor.u32 %v959, %v960
    %v962 = vshll.u32 2102212464, %v950
    %v963 = vshrl.u32 920167782, %v951
    %v964 = vor.u32 %v962, %v963
    %v965 = vshll.u32 920167782, %v950
    %v966 = vshrl.u32 1326507024, %v951
    %v967 = vor.u32 %v965, %v966
    %vm968 = vcmp.lt.s32.totalorder %v949, 1
    %vm969 = vcmp.lt.s32.totalorder %v949, 2
    %vm970 = vcmp.lt.s32.totalorder %v949, 3
    %vm971 = vcmp.lt.s32.totalorder %v949, 4
    %v972 = vsel %vm968, %v952, %v955
    %v973 = vsel %vm971, %v961, 2102212464
    %v974 = vsel %vm970, %v958, %v973
    %v975 = vsel %vm969, %v972, %v974
    %v976 = vsel %vm968, %v955, %v958
    %v977 = vsel %vm971, %v964, 920167782
    %v978 = vsel %vm970, %v961, %v977
    %v979 = vsel %vm969, %v976, %v978
    %v980 = vsel %vm968, %v958, %v961
    %v981 = vsel %vm971, %v967, 1326507024
    %v982 = vsel %vm970, %v964, %v981
    %v983 = vsel %vm969, %v980, %v982
    %v984 = vshll.u32 %v944, 8
    %v985 = vmul.u32.u64.compose %v984, %v983
    %v986 = vextract.low.u32 %v985
    %v987 = vextract.high.u32 %v985
    %v988 = vmul.u32.u64.compose %v984, %v979
    %v989 = vextract.low.u32 %v988
    %v990 = vextract.high.u32 %v988
    %v991 = vmul.u32 %v984, %v975
    %v992 = vadd.s32 %v987, %v989
    %vm993 = vc.u32 %v987, %v989
    %v994 = vadd.s32 %v990, 1
    %v995 = vsel %vm993, %v994, %v990
    %v996 = vadd.s32 %v991, %v995
    %v997 = vadd.s32 %v996, 536870912
    %v998 = vshrl.u32 %v997, 30
    %v999 = vshll.u32 %v998, 30
    %v1000 = vsub.s32 %v996, %v999
    %vm1001 = vcmp.lt.s32.totalorder %v1000, 0
    %v1002 = vsub.s32 0, %v1000
    %v1003 = vsel %vm1001, %v1002, %v1000
    %v1004 = vclz %v1003
    %v1005 = vsub.s32 %v1004, 2
    %vm1006 = vcmp.gt.s32.totalorder 0, %v1005
    %v1007 = vsel %vm1006, 0, %v1005
    %v1008 = vsub.s32 32, %v1007
    %v1009 = vshll.u32 %v1000, %v1007
    %v1010 = vshrl.u32 %v992, %v1008
    %v1011 = vor.u32 %v1009, %v1010
    %v1012 = vsub.s32 4294967266, %v1007
    %v1013 = vadd.s32 %v1012, 127
    %v1014 = vshll.u32 %v1013, 23
    %v1015 = vor.u32 4788187, %v1014
    %v1016 = vand.u32 2147483647, %v1015
    %v1018 = vcvt.s32.f32 %v1011
    %v1019 = vmul.f32 %v1018, %v1016
    %v1020 = vxor.u32 %v1019, 2147483648
    %v1021 = vsel %vm938, %v1020, %v1019
    %v1022 = vsub.s32 4, %v998
    %v1023 = vsel %vm938, %v1022, %v998
    %v1024 = vsel %vm937, %v182, %v1021
    %v1025 = vsel %vm937, 0, %v1023
    %v1026 = vcosq.f32.pop %v1024
    %v1027 = vsinq.f32.pop %v1024
    %vm1028 = vweird.f32 %v182
    %v1029 = vadd.s32 %v1025, 3
    %v1030 = vand.u32 %v1029, 3
    %vm1031 = vcmp.lt.s32.totalorder %v1030, 2
    %vm1032 = vcmp.eq.s32.totalorder %v1030, 0
    %v1033 = vxor.u32 %v1027, 2147483648
    %v1034 = vsel %vm1032, %v1026, %v1033
    %vm1035 = vcmp.eq.s32.totalorder %v1030, 2
    %v1036 = vxor.u32 %v1026, 2147483648
    %v1037 = vsel %vm1035, %v1036, %v1027
    %v1038 = vsel %vm1031, %v1034, %v1037
    %v1039 = vsel %vm1028, nan, %v1038
    %v1040 = vand.u32 2147483647, %v186
    %vm1041 = vcmp.le.f32.partialorder %v1040, 0.7853982
    %vm1042 = vcmp.lt.s32.totalorder %v186, 0
    %v1043 = vand.u32 %v186, 2139095040
    %v1044 = vshrl.u32 %v1043, 23
    %v1045 = vsub.s32 %v1044, 127
    %v1046 = vand.u32 2147483647, %v186
    %v1047 = vand.u32 %v1046, 8388607
    %v1048 = vor.u32 %v1047, 8388608
    %v1049 = vsub.s32 0, %v1048
    %v1050 = vadd.s32 %v1045, 1
    %vm1051 = vcmp.gt.s32.totalorder %v1050, 0
    %v1052 = vsel %vm1051, %v1050, 0
    %v1053 = vshrl.u32 %v1052, 5
    %v1054 = vand.u32 %v1052, 31
    %v1055 = vsub.s32 32, %v1054
    %v1056 = vshrl.u32 683565275, %v1055
    %v1057 = vshll.u32 683565275, %v1054
    %v1058 = vshrl.u32 2475754826, %v1055
    %v1059 = vor.u32 %v1057, %v1058
    %v1060 = vshll.u32 2475754826, %v1054
    %v1061 = vshrl.u32 2131351028, %v1055
    %v1062 = vor.u32 %v1060, %v1061
    %v1063 = vshll.u32 2131351028, %v1054
    %v1064 = vshrl.u32 2102212464, %v1055
    %v1065 = vor.u32 %v1063, %v1064
    %v1066 = vshll.u32 2102212464, %v1054
    %v1067 = vshrl.u32 920167782, %v1055
    %v1068 = vor.u32 %v1066, %v1067
    %v1069 = vshll.u32 920167782, %v1054
    %v1070 = vshrl.u32 1326507024, %v1055
    %v1071 = vor.u32 %v1069, %v1070
    %vm1072 = vcmp.lt.s32.totalorder %v1053, 1
    %vm1073 = vcmp.lt.s32.totalorder %v1053, 2
    %vm1074 = vcmp.lt.s32.totalorder %v1053, 3
    %vm1075 = vcmp.lt.s32.totalorder %v1053, 4
    %v1076 = vsel %vm1072, %v1056, %v1059
    %v1077 = vsel %vm1075, %v1065, 2102212464
    %v1078 = vsel %vm1074, %v1062, %v1077
    %v1079 = vsel %vm1073, %v1076, %v1078
    %v1080 = vsel %vm1072, %v1059, %v1062
    %v1081 = vsel %vm1075, %v1068, 920167782
    %v1082 = vsel %vm1074, %v1065, %v1081
    %v1083 = vsel %vm1073, %v1080, %v1082
    %v1084 = vsel %vm1072, %v1062, %v1065
    %v1085 = vsel %vm1075, %v1071, 1326507024
    %v1086 = vsel %vm1074, %v1068, %v1085
    %v1087 = vsel %vm1073, %v1084, %v1086
    %v1088 = vshll.u32 %v1048, 8
    %v1089 = vmul.u32.u64.compose %v1088, %v1087
    %v1090 = vextract.low.u32 %v1089
    %v1091 = vextract.high.u32 %v1089
    %v1092 = vmul.u32.u64.compose %v1088, %v1083
    %v1093 = vextract.low.u32 %v1092
    %v1094 = vextract.high.u32 %v1092
    %v1095 = vmul.u32 %v1088, %v1079
    %v1096 = vadd.s32 %v1091, %v1093
    %vm1097 = vc.u32 %v1091, %v1093
    %v1098 = vadd.s32 %v1094, 1
    %v1099 = vsel %vm1097, %v1098, %v1094
    %v1100 = vadd.s32 %v1095, %v1099
    %v1101 = vadd.s32 %v1100, 536870912
    %v1102 = vshrl.u32 %v1101, 30
    %v1103 = vshll.u32 %v1102, 30
    %v1104 = vsub.s32 %v1100, %v1103
    %vm1105 = vcmp.lt.s32.totalorder %v1104, 0
    %v1106 = vsub.s32 0, %v1104
    %v1107 = vsel %vm1105, %v1106, %v1104
    %v1108 = vclz %v1107
    %v1109 = vsub.s32 %v1108, 2
    %vm1110 = vcmp.gt.s32.totalorder 0, %v1109
    %v1111 = vsel %vm1110, 0, %v1109
    %v1112 = vsub.s32 32, %v1111
    %v1113 = vshll.u32 %v1104, %v1111
    %v1114 = vshrl.u32 %v1096, %v1112
    %v1115 = vor.u32 %v1113, %v1114
    %v1116 = vsub.s32 4294967266, %v1111
    %v1117 = vadd.s32 %v1116, 127
    %v1118 = vshll.u32 %v1117, 23
    %v1119 = vor.u32 4788187, %v1118
    %v1120 = vand.u32 2147483647, %v1119
    %v1122 = vcvt.s32.f32 %v1115
    %v1123 = vmul.f32 %v1122, %v1120
    %v1124 = vxor.u32 %v1123, 2147483648
    %v1125 = vsel %vm1042, %v1124, %v1123
    %v1126 = vsub.s32 4, %v1102
    %v1127 = vsel %vm1042, %v1126, %v1102
    %v1128 = vsel %vm1041, %v186, %v1125
    %v1129 = vsel %vm1041, 0, %v1127
    %v1130 = vcosq.f32.pop %v1128
    %v1131 = vsinq.f32.pop %v1128
    %vm1132 = vweird.f32 %v186
    %v1133 = vadd.s32 %v1129, 3
    %v1134 = vand.u32 %v1133, 3
    %vm1135 = vcmp.lt.s32.totalorder %v1134, 2
    %vm1136 = vcmp.eq.s32.totalorder %v1134, 0
    %v1137 = vxor.u32 %v1131, 2147483648
    %v1138 = vsel %vm1136, %v1130, %v1137
    %vm1139 = vcmp.eq.s32.totalorder %v1134, 2
    %v1140 = vxor.u32 %v1130, 2147483648
    %v1141 = vsel %vm1139, %v1140, %v1131
    %v1142 = vsel %vm1135, %v1138, %v1141
    %v1143 = vsel %vm1132, nan, %v1142
    %v1144 = vand.u32 2147483647, %v188
    %vm1145 = vcmp.le.f32.partialorder %v1144, 0.7853982
    %vm1146 = vcmp.lt.s32.totalorder %v188, 0
    %v1147 = vand.u32 %v188, 2139095040
    %v1148 = vshrl.u32 %v1147, 23
    %v1149 = vsub.s32 %v1148, 127
    %v1150 = vand.u32 2147483647, %v188
    %v1151 = vand.u32 %v1150, 8388607
    %v1152 = vor.u32 %v1151, 8388608
    %v1153 = vsub.s32 0, %v1152
    %v1154 = vadd.s32 %v1149, 1
    %vm1155 = vcmp.gt.s32.totalorder %v1154, 0
    %v1156 = vsel %vm1155, %v1154, 0
    %v1157 = vshrl.u32 %v1156, 5
    %v1158 = vand.u32 %v1156, 31
    %v1159 = vsub.s32 32, %v1158
    %v1160 = vshrl.u32 683565275, %v1159
    %v1161 = vshll.u32 683565275, %v1158
    %v1162 = vshrl.u32 2475754826, %v1159
    %v1163 = vor.u32 %v1161, %v1162
    %v1164 = vshll.u32 2475754826, %v1158
    %v1165 = vshrl.u32 2131351028, %v1159
    %v1166 = vor.u32 %v1164, %v1165
    %v1167 = vshll.u32 2131351028, %v1158
    %v1168 = vshrl.u32 2102212464, %v1159
    %v1169 = vor.u32 %v1167, %v1168
    %v1170 = vshll.u32 2102212464, %v1158
    %v1171 = vshrl.u32 920167782, %v1159
    %v1172 = vor.u32 %v1170, %v1171
    %v1173 = vshll.u32 920167782, %v1158
    %v1174 = vshrl.u32 1326507024, %v1159
    %v1175 = vor.u32 %v1173, %v1174
    %vm1176 = vcmp.lt.s32.totalorder %v1157, 1
    %vm1177 = vcmp.lt.s32.totalorder %v1157, 2
    %vm1178 = vcmp.lt.s32.totalorder %v1157, 3
    %vm1179 = vcmp.lt.s32.totalorder %v1157, 4
    %v1180 = vsel %vm1176, %v1160, %v1163
    %v1181 = vsel %vm1179, %v1169, 2102212464
    %v1182 = vsel %vm1178, %v1166, %v1181
    %v1183 = vsel %vm1177, %v1180, %v1182
    %v1184 = vsel %vm1176, %v1163, %v1166
    %v1185 = vsel %vm1179, %v1172, 920167782
    %v1186 = vsel %vm1178, %v1169, %v1185
    %v1187 = vsel %vm1177, %v1184, %v1186
    %v1188 = vsel %vm1176, %v1166, %v1169
    %v1189 = vsel %vm1179, %v1175, 1326507024
    %v1190 = vsel %vm1178, %v1172, %v1189
    %v1191 = vsel %vm1177, %v1188, %v1190
    %v1192 = vshll.u32 %v1152, 8
    %v1193 = vmul.u32.u64.compose %v1192, %v1191
    %v1194 = vextract.low.u32 %v1193
    %v1195 = vextract.high.u32 %v1193
    %v1196 = vmul.u32.u64.compose %v1192, %v1187
    %v1197 = vextract.low.u32 %v1196
    %v1198 = vextract.high.u32 %v1196
    %v1199 = vmul.u32 %v1192, %v1183
    %v1200 = vadd.s32 %v1195, %v1197
    %vm1201 = vc.u32 %v1195, %v1197
    %v1202 = vadd.s32 %v1198, 1
    %v1203 = vsel %vm1201, %v1202, %v1198
    %v1204 = vadd.s32 %v1199, %v1203
    %v1205 = vadd.s32 %v1204, 536870912
    %v1206 = vshrl.u32 %v1205, 30
    %v1207 = vshll.u32 %v1206, 30
    %v1208 = vsub.s32 %v1204, %v1207
    %vm1209 = vcmp.lt.s32.totalorder %v1208, 0
    %v1210 = vsub.s32 0, %v1208
    %v1211 = vsel %vm1209, %v1210, %v1208
    %v1212 = vclz %v1211
    %v1213 = vsub.s32 %v1212, 2
    %vm1214 = vcmp.gt.s32.totalorder 0, %v1213
    %v1215 = vsel %vm1214, 0, %v1213
    %v1216 = vsub.s32 32, %v1215
    %v1217 = vshll.u32 %v1208, %v1215
    %v1218 = vshrl.u32 %v1200, %v1216
    %v1219 = vor.u32 %v1217, %v1218
    %v1220 = vsub.s32 4294967266, %v1215
    %v1221 = vadd.s32 %v1220, 127
    %v1222 = vshll.u32 %v1221, 23
    %v1223 = vor.u32 4788187, %v1222
    %v1224 = vand.u32 2147483647, %v1223
    %v1226 = vcvt.s32.f32 %v1219
    %v1227 = vmul.f32 %v1226, %v1224
    %v1228 = vxor.u32 %v1227, 2147483648
    %v1229 = vsel %vm1146, %v1228, %v1227
    %v1230 = vsub.s32 4, %v1206
    %v1231 = vsel %vm1146, %v1230, %v1206
    %v1232 = vsel %vm1145, %v188, %v1229
    %v1233 = vsel %vm1145, 0, %v1231
    %v1234 = vcosq.f32.pop %v1232
    %v1235 = vsinq.f32.pop %v1232
    %vm1236 = vweird.f32 %v188
    %v1237 = vadd.s32 %v1233, 3
    %v1238 = vand.u32 %v1237, 3
    %vm1239 = vcmp.lt.s32.totalorder %v1238, 2
    %vm1240 = vcmp.eq.s32.totalorder %v1238, 0
    %v1241 = vxor.u32 %v1235, 2147483648
    %v1242 = vsel %vm1240, %v1234, %v1241
    %vm1243 = vcmp.eq.s32.totalorder %v1238, 2
    %v1244 = vxor.u32 %v1234, 2147483648
    %v1245 = vsel %vm1243, %v1244, %v1235
    %v1246 = vsel %vm1239, %v1242, %v1245
    %v1247 = vsel %vm1236, nan, %v1246
    %v1248 = vand.u32 2147483647, %v192
    %vm1249 = vcmp.le.f32.partialorder %v1248, 0.7853982
    %vm1250 = vcmp.lt.s32.totalorder %v192, 0
    %v1251 = vand.u32 %v192, 2139095040
    %v1252 = vshrl.u32 %v1251, 23
    %v1253 = vsub.s32 %v1252, 127
    %v1254 = vand.u32 2147483647, %v192
    %v1255 = vand.u32 %v1254, 8388607
    %v1256 = vor.u32 %v1255, 8388608
    %v1257 = vsub.s32 0, %v1256
    %v1258 = vadd.s32 %v1253, 1
    %vm1259 = vcmp.gt.s32.totalorder %v1258, 0
    %v1260 = vsel %vm1259, %v1258, 0
    %v1261 = vshrl.u32 %v1260, 5
    %v1262 = vand.u32 %v1260, 31
    %v1263 = vsub.s32 32, %v1262
    %v1264 = vshrl.u32 683565275, %v1263
    %v1265 = vshll.u32 683565275, %v1262
    %v1266 = vshrl.u32 2475754826, %v1263
    %v1267 = vor.u32 %v1265, %v1266
    %v1268 = vshll.u32 2475754826, %v1262
    %v1269 = vshrl.u32 2131351028, %v1263
    %v1270 = vor.u32 %v1268, %v1269
    %v1271 = vshll.u32 2131351028, %v1262
    %v1272 = vshrl.u32 2102212464, %v1263
    %v1273 = vor.u32 %v1271, %v1272
    %v1274 = vshll.u32 2102212464, %v1262
    %v1275 = vshrl.u32 920167782, %v1263
    %v1276 = vor.u32 %v1274, %v1275
    %v1277 = vshll.u32 920167782, %v1262
    %v1278 = vshrl.u32 1326507024, %v1263
    %v1279 = vor.u32 %v1277, %v1278
    %vm1280 = vcmp.lt.s32.totalorder %v1261, 1
    %vm1281 = vcmp.lt.s32.totalorder %v1261, 2
    %vm1282 = vcmp.lt.s32.totalorder %v1261, 3
    %vm1283 = vcmp.lt.s32.totalorder %v1261, 4
    %v1284 = vsel %vm1280, %v1264, %v1267
    %v1285 = vsel %vm1283, %v1273, 2102212464
    %v1286 = vsel %vm1282, %v1270, %v1285
    %v1287 = vsel %vm1281, %v1284, %v1286
    %v1288 = vsel %vm1280, %v1267, %v1270
    %v1289 = vsel %vm1283, %v1276, 920167782
    %v1290 = vsel %vm1282, %v1273, %v1289
    %v1291 = vsel %vm1281, %v1288, %v1290
    %v1292 = vsel %vm1280, %v1270, %v1273
    %v1293 = vsel %vm1283, %v1279, 1326507024
    %v1294 = vsel %vm1282, %v1276, %v1293
    %v1295 = vsel %vm1281, %v1292, %v1294
    %v1296 = vshll.u32 %v1256, 8
    %v1297 = vmul.u32.u64.compose %v1296, %v1295
    %v1298 = vextract.low.u32 %v1297
    %v1299 = vextract.high.u32 %v1297
    %v1300 = vmul.u32.u64.compose %v1296, %v1291
    %v1301 = vextract.low.u32 %v1300
    %v1302 = vextract.high.u32 %v1300
    %v1303 = vmul.u32 %v1296, %v1287
    %v1304 = vadd.s32 %v1299, %v1301
    %vm1305 = vc.u32 %v1299, %v1301
    %v1306 = vadd.s32 %v1302, 1
    %v1307 = vsel %vm1305, %v1306, %v1302
    %v1308 = vadd.s32 %v1303, %v1307
    %v1309 = vadd.s32 %v1308, 536870912
    %v1310 = vshrl.u32 %v1309, 30
    %v1311 = vshll.u32 %v1310, 30
    %v1312 = vsub.s32 %v1308, %v1311
    %vm1313 = vcmp.lt.s32.totalorder %v1312, 0
    %v1314 = vsub.s32 0, %v1312
    %v1315 = vsel %vm1313, %v1314, %v1312
    %v1316 = vclz %v1315
    %v1317 = vsub.s32 %v1316, 2
    %vm1318 = vcmp.gt.s32.totalorder 0, %v1317
    %v1319 = vsel %vm1318, 0, %v1317
    %v1320 = vsub.s32 32, %v1319
    %v1321 = vshll.u32 %v1312, %v1319
    %v1322 = vshrl.u32 %v1304, %v1320
    %v1323 = vor.u32 %v1321, %v1322
    %v1324 = vsub.s32 4294967266, %v1319
    %v1325 = vadd.s32 %v1324, 127
    %v1326 = vshll.u32 %v1325, 23
    %v1327 = vor.u32 4788187, %v1326
    %v1328 = vand.u32 2147483647, %v1327
    %v1330 = vcvt.s32.f32 %v1323
    %v1331 = vmul.f32 %v1330, %v1328
    %v1332 = vxor.u32 %v1331, 2147483648
    %v1333 = vsel %vm1250, %v1332, %v1331
    %v1334 = vsub.s32 4, %v1310
    %v1335 = vsel %vm1250, %v1334, %v1310
    %v1336 = vsel %vm1249, %v192, %v1333
    %v1337 = vsel %vm1249, 0, %v1335
    %v1338 = vcosq.f32.pop %v1336
    %v1339 = vsinq.f32.pop %v1336
    %vm1340 = vweird.f32 %v192
    %v1341 = vadd.s32 %v1337, 3
    %v1342 = vand.u32 %v1341, 3
    %vm1343 = vcmp.lt.s32.totalorder %v1342, 2
    %vm1344 = vcmp.eq.s32.totalorder %v1342, 0
    %v1345 = vxor.u32 %v1339, 2147483648
    %v1346 = vsel %vm1344, %v1338, %v1345
    %vm1347 = vcmp.eq.s32.totalorder %v1342, 2
    %v1348 = vxor.u32 %v1338, 2147483648
    %v1349 = vsel %vm1347, %v1348, %v1339
    %v1350 = vsel %vm1343, %v1346, %v1349
    %v1351 = vsel %vm1340, nan, %v1350
    %v1352 = vand.u32 2147483647, %v194
    %vm1353 = vcmp.le.f32.partialorder %v1352, 0.7853982
    %vm1354 = vcmp.lt.s32.totalorder %v194, 0
    %v1355 = vand.u32 %v194, 2139095040
    %v1356 = vshrl.u32 %v1355, 23
    %v1357 = vsub.s32 %v1356, 127
    %v1358 = vand.u32 2147483647, %v194
    %v1359 = vand.u32 %v1358, 8388607
    %v1360 = vor.u32 %v1359, 8388608
    %v1361 = vsub.s32 0, %v1360
    %v1362 = vadd.s32 %v1357, 1
    %vm1363 = vcmp.gt.s32.totalorder %v1362, 0
    %v1364 = vsel %vm1363, %v1362, 0
    %v1365 = vshrl.u32 %v1364, 5
    %v1366 = vand.u32 %v1364, 31
    %v1367 = vsub.s32 32, %v1366
    %v1368 = vshrl.u32 683565275, %v1367
    %v1369 = vshll.u32 683565275, %v1366
    %v1370 = vshrl.u32 2475754826, %v1367
    %v1371 = vor.u32 %v1369, %v1370
    %v1372 = vshll.u32 2475754826, %v1366
    %v1373 = vshrl.u32 2131351028, %v1367
    %v1374 = vor.u32 %v1372, %v1373
    %v1375 = vshll.u32 2131351028, %v1366
    %v1376 = vshrl.u32 2102212464, %v1367
    %v1377 = vor.u32 %v1375, %v1376
    %v1378 = vshll.u32 2102212464, %v1366
    %v1379 = vshrl.u32 920167782, %v1367
    %v1380 = vor.u32 %v1378, %v1379
    %v1381 = vshll.u32 920167782, %v1366
    %v1382 = vshrl.u32 1326507024, %v1367
    %v1383 = vor.u32 %v1381, %v1382
    %vm1384 = vcmp.lt.s32.totalorder %v1365, 1
    %vm1385 = vcmp.lt.s32.totalorder %v1365, 2
    %vm1386 = vcmp.lt.s32.totalorder %v1365, 3
    %vm1387 = vcmp.lt.s32.totalorder %v1365, 4
    %v1388 = vsel %vm1384, %v1368, %v1371
    %v1389 = vsel %vm1387, %v1377, 2102212464
    %v1390 = vsel %vm1386, %v1374, %v1389
    %v1391 = vsel %vm1385, %v1388, %v1390
    %v1392 = vsel %vm1384, %v1371, %v1374
    %v1393 = vsel %vm1387, %v1380, 920167782
    %v1394 = vsel %vm1386, %v1377, %v1393
    %v1395 = vsel %vm1385, %v1392, %v1394
    %v1396 = vsel %vm1384, %v1374, %v1377
    %v1397 = vsel %vm1387, %v1383, 1326507024
    %v1398 = vsel %vm1386, %v1380, %v1397
    %v1399 = vsel %vm1385, %v1396, %v1398
    %v1400 = vshll.u32 %v1360, 8
    %v1401 = vmul.u32.u64.compose %v1400, %v1399
    %v1402 = vextract.low.u32 %v1401
    %v1403 = vextract.high.u32 %v1401
    %v1404 = vmul.u32.u64.compose %v1400, %v1395
    %v1405 = vextract.low.u32 %v1404
    %v1406 = vextract.high.u32 %v1404
    %v1407 = vmul.u32 %v1400, %v1391
    %v1408 = vadd.s32 %v1403, %v1405
    %vm1409 = vc.u32 %v1403, %v1405
    %v1410 = vadd.s32 %v1406, 1
    %v1411 = vsel %vm1409, %v1410, %v1406
    %v1412 = vadd.s32 %v1407, %v1411
    %v1413 = vadd.s32 %v1412, 536870912
    %v1414 = vshrl.u32 %v1413, 30
    %v1415 = vshll.u32 %v1414, 30
    %v1416 = vsub.s32 %v1412, %v1415
    %vm1417 = vcmp.lt.s32.totalorder %v1416, 0
    %v1418 = vsub.s32 0, %v1416
    %v1419 = vsel %vm1417, %v1418, %v1416
    %v1420 = vclz %v1419
    %v1421 = vsub.s32 %v1420, 2
    %vm1422 = vcmp.gt.s32.totalorder 0, %v1421
    %v1423 = vsel %vm1422, 0, %v1421
    %v1424 = vsub.s32 32, %v1423
    %v1425 = vshll.u32 %v1416, %v1423
    %v1426 = vshrl.u32 %v1408, %v1424
    %v1427 = vor.u32 %v1425, %v1426
    %v1428 = vsub.s32 4294967266, %v1423
    %v1429 = vadd.s32 %v1428, 127
    %v1430 = vshll.u32 %v1429, 23
    %v1431 = vor.u32 4788187, %v1430
    %v1432 = vand.u32 2147483647, %v1431
    %v1434 = vcvt.s32.f32 %v1427
    %v1435 = vmul.f32 %v1434, %v1432
    %v1436 = vxor.u32 %v1435, 2147483648
    %v1437 = vsel %vm1354, %v1436, %v1435
    %v1438 = vsub.s32 4, %v1414
    %v1439 = vsel %vm1354, %v1438, %v1414
    %v1440 = vsel %vm1353, %v194, %v1437
    %v1441 = vsel %vm1353, 0, %v1439
    %v1442 = vcosq.f32.pop %v1440
    %v1443 = vsinq.f32.pop %v1440
    %vm1444 = vweird.f32 %v194
    %v1445 = vadd.s32 %v1441, 3
    %v1446 = vand.u32 %v1445, 3
    %vm1447 = vcmp.lt.s32.totalorder %v1446, 2
    %vm1448 = vcmp.eq.s32.totalorder %v1446, 0
    %v1449 = vxor.u32 %v1443, 2147483648
    %v1450 = vsel %vm1448, %v1442, %v1449
    %vm1451 = vcmp.eq.s32.totalorder %v1446, 2
    %v1452 = vxor.u32 %v1442, 2147483648
    %v1453 = vsel %vm1451, %v1452, %v1443
    %v1454 = vsel %vm1447, %v1450, %v1453
    %v1455 = vsel %vm1444, nan, %v1454
    %v1456 = vand.u32 2147483647, %v198
    %vm1457 = vcmp.le.f32.partialorder %v1456, 0.7853982
    %vm1458 = vcmp.lt.s32.totalorder %v198, 0
    %v1459 = vand.u32 %v198, 2139095040
    %v1460 = vshrl.u32 %v1459, 23
    %v1461 = vsub.s32 %v1460, 127
    %v1462 = vand.u32 2147483647, %v198
    %v1463 = vand.u32 %v1462, 8388607
    %v1464 = vor.u32 %v1463, 8388608
    %v1465 = vsub.s32 0, %v1464
    %v1466 = vadd.s32 %v1461, 1
    %vm1467 = vcmp.gt.s32.totalorder %v1466, 0
    %v1468 = vsel %vm1467, %v1466, 0
    %v1469 = vshrl.u32 %v1468, 5
    %v1470 = vand.u32 %v1468, 31
    %v1471 = vsub.s32 32, %v1470
    %v1472 = vshrl.u32 683565275, %v1471
    %v1473 = vshll.u32 683565275, %v1470
    %v1474 = vshrl.u32 2475754826, %v1471
    %v1475 = vor.u32 %v1473, %v1474
    %v1476 = vshll.u32 2475754826, %v1470
    %v1477 = vshrl.u32 2131351028, %v1471
    %v1478 = vor.u32 %v1476, %v1477
    %v1479 = vshll.u32 2131351028, %v1470
    %v1480 = vshrl.u32 2102212464, %v1471
    %v1481 = vor.u32 %v1479, %v1480
    %v1482 = vshll.u32 2102212464, %v1470
    %v1483 = vshrl.u32 920167782, %v1471
    %v1484 = vor.u32 %v1482, %v1483
    %v1485 = vshll.u32 920167782, %v1470
    %v1486 = vshrl.u32 1326507024, %v1471
    %v1487 = vor.u32 %v1485, %v1486
    %vm1488 = vcmp.lt.s32.totalorder %v1469, 1
    %vm1489 = vcmp.lt.s32.totalorder %v1469, 2
    %vm1490 = vcmp.lt.s32.totalorder %v1469, 3
    %vm1491 = vcmp.lt.s32.totalorder %v1469, 4
    %v1492 = vsel %vm1488, %v1472, %v1475
    %v1493 = vsel %vm1491, %v1481, 2102212464
    %v1494 = vsel %vm1490, %v1478, %v1493
    %v1495 = vsel %vm1489, %v1492, %v1494
    %v1496 = vsel %vm1488, %v1475, %v1478
    %v1497 = vsel %vm1491, %v1484, 920167782
    %v1498 = vsel %vm1490, %v1481, %v1497
    %v1499 = vsel %vm1489, %v1496, %v1498
    %v1500 = vsel %vm1488, %v1478, %v1481
    %v1501 = vsel %vm1491, %v1487, 1326507024
    %v1502 = vsel %vm1490, %v1484, %v1501
    %v1503 = vsel %vm1489, %v1500, %v1502
    %v1504 = vshll.u32 %v1464, 8
    %v1505 = vmul.u32.u64.compose %v1504, %v1503
    %v1506 = vextract.low.u32 %v1505
    %v1507 = vextract.high.u32 %v1505
    %v1508 = vmul.u32.u64.compose %v1504, %v1499
    %v1509 = vextract.low.u32 %v1508
    %v1510 = vextract.high.u32 %v1508
    %v1511 = vmul.u32 %v1504, %v1495
    %v1512 = vadd.s32 %v1507, %v1509
    %vm1513 = vc.u32 %v1507, %v1509
    %v1514 = vadd.s32 %v1510, 1
    %v1515 = vsel %vm1513, %v1514, %v1510
    %v1516 = vadd.s32 %v1511, %v1515
    %v1517 = vadd.s32 %v1516, 536870912
    %v1518 = vshrl.u32 %v1517, 30
    %v1519 = vshll.u32 %v1518, 30
    %v1520 = vsub.s32 %v1516, %v1519
    %vm1521 = vcmp.lt.s32.totalorder %v1520, 0
    %v1522 = vsub.s32 0, %v1520
    %v1523 = vsel %vm1521, %v1522, %v1520
    %v1524 = vclz %v1523
    %v1525 = vsub.s32 %v1524, 2
    %vm1526 = vcmp.gt.s32.totalorder 0, %v1525
    %v1527 = vsel %vm1526, 0, %v1525
    %v1528 = vsub.s32 32, %v1527
    %v1529 = vshll.u32 %v1520, %v1527
    %v1530 = vshrl.u32 %v1512, %v1528
    %v1531 = vor.u32 %v1529, %v1530
    %v1532 = vsub.s32 4294967266, %v1527
    %v1533 = vadd.s32 %v1532, 127
    %v1534 = vshll.u32 %v1533, 23
    %v1535 = vor.u32 4788187, %v1534
    %v1536 = vand.u32 2147483647, %v1535
    %v1538 = vcvt.s32.f32 %v1531
    %v1539 = vmul.f32 %v1538, %v1536
    %v1540 = vxor.u32 %v1539, 2147483648
    %v1541 = vsel %vm1458, %v1540, %v1539
    %v1542 = vsub.s32 4, %v1518
    %v1543 = vsel %vm1458, %v1542, %v1518
    %v1544 = vsel %vm1457, %v198, %v1541
    %v1545 = vsel %vm1457, 0, %v1543
    %v1546 = vcosq.f32.pop %v1544
    %v1547 = vsinq.f32.pop %v1544
    %vm1548 = vweird.f32 %v198
    %v1549 = vadd.s32 %v1545, 3
    %v1550 = vand.u32 %v1549, 3
    %vm1551 = vcmp.lt.s32.totalorder %v1550, 2
    %vm1552 = vcmp.eq.s32.totalorder %v1550, 0
    %v1553 = vxor.u32 %v1547, 2147483648
    %v1554 = vsel %vm1552, %v1546, %v1553
    %vm1555 = vcmp.eq.s32.totalorder %v1550, 2
    %v1556 = vxor.u32 %v1546, 2147483648
    %v1557 = vsel %vm1555, %v1556, %v1547
    %v1558 = vsel %vm1551, %v1554, %v1557
    %v1559 = vsel %vm1548, nan, %v1558
    %v1560 = vand.u32 2147483647, %v200
    %vm1561 = vcmp.le.f32.partialorder %v1560, 0.7853982
    %vm1562 = vcmp.lt.s32.totalorder %v200, 0
    %v1563 = vand.u32 %v200, 2139095040
    %v1564 = vshrl.u32 %v1563, 23
    %v1565 = vsub.s32 %v1564, 127
    %v1566 = vand.u32 2147483647, %v200
    %v1567 = vand.u32 %v1566, 8388607
    %v1568 = vor.u32 %v1567, 8388608
    %v1569 = vsub.s32 0, %v1568
    %v1570 = vadd.s32 %v1565, 1
    %vm1571 = vcmp.gt.s32.totalorder %v1570, 0
    %v1572 = vsel %vm1571, %v1570, 0
    %v1573 = vshrl.u32 %v1572, 5
    %v1574 = vand.u32 %v1572, 31
    %v1575 = vsub.s32 32, %v1574
    %v1576 = vshrl.u32 683565275, %v1575
    %v1577 = vshll.u32 683565275, %v1574
    %v1578 = vshrl.u32 2475754826, %v1575
    %v1579 = vor.u32 %v1577, %v1578
    %v1580 = vshll.u32 2475754826, %v1574
    %v1581 = vshrl.u32 2131351028, %v1575
    %v1582 = vor.u32 %v1580, %v1581
    %v1583 = vshll.u32 2131351028, %v1574
    %v1584 = vshrl.u32 2102212464, %v1575
    %v1585 = vor.u32 %v1583, %v1584
    %v1586 = vshll.u32 2102212464, %v1574
    %v1587 = vshrl.u32 920167782, %v1575
    %v1588 = vor.u32 %v1586, %v1587
    %v1589 = vshll.u32 920167782, %v1574
    %v1590 = vshrl.u32 1326507024, %v1575
    %v1591 = vor.u32 %v1589, %v1590
    %vm1592 = vcmp.lt.s32.totalorder %v1573, 1
    %vm1593 = vcmp.lt.s32.totalorder %v1573, 2
    %vm1594 = vcmp.lt.s32.totalorder %v1573, 3
    %vm1595 = vcmp.lt.s32.totalorder %v1573, 4
    %v1596 = vsel %vm1592, %v1576, %v1579
    %v1597 = vsel %vm1595, %v1585, 2102212464
    %v1598 = vsel %vm1594, %v1582, %v1597
    %v1599 = vsel %vm1593, %v1596, %v1598
    %v1600 = vsel %vm1592, %v1579, %v1582
    %v1601 = vsel %vm1595, %v1588, 920167782
    %v1602 = vsel %vm1594, %v1585, %v1601
    %v1603 = vsel %vm1593, %v1600, %v1602
    %v1604 = vsel %vm1592, %v1582, %v1585
    %v1605 = vsel %vm1595, %v1591, 1326507024
    %v1606 = vsel %vm1594, %v1588, %v1605
    %v1607 = vsel %vm1593, %v1604, %v1606
    %v1608 = vshll.u32 %v1568, 8
    %v1609 = vmul.u32.u64.compose %v1608, %v1607
    %v1610 = vextract.low.u32 %v1609
    %v1611 = vextract.high.u32 %v1609
    %v1612 = vmul.u32.u64.compose %v1608, %v1603
    %v1613 = vextract.low.u32 %v1612
    %v1614 = vextract.high.u32 %v1612
    %v1615 = vmul.u32 %v1608, %v1599
    %v1616 = vadd.s32 %v1611, %v1613
    %vm1617 = vc.u32 %v1611, %v1613
    %v1618 = vadd.s32 %v1614, 1
    %v1619 = vsel %vm1617, %v1618, %v1614
    %v1620 = vadd.s32 %v1615, %v1619
    %v1621 = vadd.s32 %v1620, 536870912
    %v1622 = vshrl.u32 %v1621, 30
    %v1623 = vshll.u32 %v1622, 30
    %v1624 = vsub.s32 %v1620, %v1623
    %vm1625 = vcmp.lt.s32.totalorder %v1624, 0
    %v1626 = vsub.s32 0, %v1624
    %v1627 = vsel %vm1625, %v1626, %v1624
    %v1628 = vclz %v1627
    %v1629 = vsub.s32 %v1628, 2
    %vm1630 = vcmp.gt.s32.totalorder 0, %v1629
    %v1631 = vsel %vm1630, 0, %v1629
    %v1632 = vsub.s32 32, %v1631
    %v1633 = vshll.u32 %v1624, %v1631
    %v1634 = vshrl.u32 %v1616, %v1632
    %v1635 = vor.u32 %v1633, %v1634
    %v1636 = vsub.s32 4294967266, %v1631
    %v1637 = vadd.s32 %v1636, 127
    %v1638 = vshll.u32 %v1637, 23
    %v1639 = vor.u32 4788187, %v1638
    %v1640 = vand.u32 2147483647, %v1639
    %v1642 = vcvt.s32.f32 %v1635
    %v1643 = vmul.f32 %v1642, %v1640
    %v1644 = vxor.u32 %v1643, 2147483648
    %v1645 = vsel %vm1562, %v1644, %v1643
    %v1646 = vsub.s32 4, %v1622
    %v1647 = vsel %vm1562, %v1646, %v1622
    %v1648 = vsel %vm1561, %v200, %v1645
    %v1649 = vsel %vm1561, 0, %v1647
    %v1650 = vcosq.f32.pop %v1648
    %v1651 = vsinq.f32.pop %v1648
    %vm1652 = vweird.f32 %v200
    %v1653 = vadd.s32 %v1649, 3
    %v1654 = vand.u32 %v1653, 3
    %vm1655 = vcmp.lt.s32.totalorder %v1654, 2
    %vm1656 = vcmp.eq.s32.totalorder %v1654, 0
    %v1657 = vxor.u32 %v1651, 2147483648
    %v1658 = vsel %vm1656, %v1650, %v1657
    %vm1659 = vcmp.eq.s32.totalorder %v1654, 2
    %v1660 = vxor.u32 %v1650, 2147483648
    %v1661 = vsel %vm1659, %v1660, %v1651
    %v1662 = vsel %vm1655, %v1658, %v1661
    %v1663 = vsel %vm1652, nan, %v1662
    %v1664 = vand.u32 2147483647, %v204
    %vm1665 = vcmp.le.f32.partialorder %v1664, 0.7853982
    %vm1666 = vcmp.lt.s32.totalorder %v204, 0
    %v1667 = vand.u32 %v204, 2139095040
    %v1668 = vshrl.u32 %v1667, 23
    %v1669 = vsub.s32 %v1668, 127
    %v1670 = vand.u32 2147483647, %v204
    %v1671 = vand.u32 %v1670, 8388607
    %v1672 = vor.u32 %v1671, 8388608
    %v1673 = vsub.s32 0, %v1672
    %v1674 = vadd.s32 %v1669, 1
    %vm1675 = vcmp.gt.s32.totalorder %v1674, 0
    %v1676 = vsel %vm1675, %v1674, 0
    %v1677 = vshrl.u32 %v1676, 5
    %v1678 = vand.u32 %v1676, 31
    %v1679 = vsub.s32 32, %v1678
    %v1680 = vshrl.u32 683565275, %v1679
    %v1681 = vshll.u32 683565275, %v1678
    %v1682 = vshrl.u32 2475754826, %v1679
    %v1683 = vor.u32 %v1681, %v1682
    %v1684 = vshll.u32 2475754826, %v1678
    %v1685 = vshrl.u32 2131351028, %v1679
    %v1686 = vor.u32 %v1684, %v1685
    %v1687 = vshll.u32 2131351028, %v1678
    %v1688 = vshrl.u32 2102212464, %v1679
    %v1689 = vor.u32 %v1687, %v1688
    %v1690 = vshll.u32 2102212464, %v1678
    %v1691 = vshrl.u32 920167782, %v1679
    %v1692 = vor.u32 %v1690, %v1691
    %v1693 = vshll.u32 920167782, %v1678
    %v1694 = vshrl.u32 1326507024, %v1679
    %v1695 = vor.u32 %v1693, %v1694
    %vm1696 = vcmp.lt.s32.totalorder %v1677, 1
    %vm1697 = vcmp.lt.s32.totalorder %v1677, 2
    %vm1698 = vcmp.lt.s32.totalorder %v1677, 3
    %vm1699 = vcmp.lt.s32.totalorder %v1677, 4
    %v1700 = vsel %vm1696, %v1680, %v1683
    %v1701 = vsel %vm1699, %v1689, 2102212464
    %v1702 = vsel %vm1698, %v1686, %v1701
    %v1703 = vsel %vm1697, %v1700, %v1702
    %v1704 = vsel %vm1696, %v1683, %v1686
    %v1705 = vsel %vm1699, %v1692, 920167782
    %v1706 = vsel %vm1698, %v1689, %v1705
    %v1707 = vsel %vm1697, %v1704, %v1706
    %v1708 = vsel %vm1696, %v1686, %v1689
    %v1709 = vsel %vm1699, %v1695, 1326507024
    %v1710 = vsel %vm1698, %v1692, %v1709
    %v1711 = vsel %vm1697, %v1708, %v1710
    %v1712 = vshll.u32 %v1672, 8
    %v1713 = vmul.u32.u64.compose %v1712, %v1711
    %v1714 = vextract.low.u32 %v1713
    %v1715 = vextract.high.u32 %v1713
    %v1716 = vmul.u32.u64.compose %v1712, %v1707
    %v1717 = vextract.low.u32 %v1716
    %v1718 = vextract.high.u32 %v1716
    %v1719 = vmul.u32 %v1712, %v1703
    %v1720 = vadd.s32 %v1715, %v1717
    %vm1721 = vc.u32 %v1715, %v1717
    %v1722 = vadd.s32 %v1718, 1
    %v1723 = vsel %vm1721, %v1722, %v1718
    %v1724 = vadd.s32 %v1719, %v1723
    %v1725 = vadd.s32 %v1724, 536870912
    %v1726 = vshrl.u32 %v1725, 30
    %v1727 = vshll.u32 %v1726, 30
    %v1728 = vsub.s32 %v1724, %v1727
    %vm1729 = vcmp.lt.s32.totalorder %v1728, 0
    %v1730 = vsub.s32 0, %v1728
    %v1731 = vsel %vm1729, %v1730, %v1728
    %v1732 = vclz %v1731
    %v1733 = vsub.s32 %v1732, 2
    %vm1734 = vcmp.gt.s32.totalorder 0, %v1733
    %v1735 = vsel %vm1734, 0, %v1733
    %v1736 = vsub.s32 32, %v1735
    %v1737 = vshll.u32 %v1728, %v1735
    %v1738 = vshrl.u32 %v1720, %v1736
    %v1739 = vor.u32 %v1737, %v1738
    %v1740 = vsub.s32 4294967266, %v1735
    %v1741 = vadd.s32 %v1740, 127
    %v1742 = vshll.u32 %v1741, 23
    %v1743 = vor.u32 4788187, %v1742
    %v1744 = vand.u32 2147483647, %v1743
    %v1746 = vcvt.s32.f32 %v1739
    %v1747 = vmul.f32 %v1746, %v1744
    %v1748 = vxor.u32 %v1747, 2147483648
    %v1749 = vsel %vm1666, %v1748, %v1747
    %v1750 = vsub.s32 4, %v1726
    %v1751 = vsel %vm1666, %v1750, %v1726
    %v1752 = vsel %vm1665, %v204, %v1749
    %v1753 = vsel %vm1665, 0, %v1751
    %v1754 = vcosq.f32.pop %v1752
    %v1755 = vsinq.f32.pop %v1752
    %vm1756 = vweird.f32 %v204
    %v1757 = vadd.s32 %v1753, 3
    %v1758 = vand.u32 %v1757, 3
    %vm1759 = vcmp.lt.s32.totalorder %v1758, 2
    %vm1760 = vcmp.eq.s32.totalorder %v1758, 0
    %v1761 = vxor.u32 %v1755, 2147483648
    %v1762 = vsel %vm1760, %v1754, %v1761
    %vm1763 = vcmp.eq.s32.totalorder %v1758, 2
    %v1764 = vxor.u32 %v1754, 2147483648
    %v1765 = vsel %vm1763, %v1764, %v1755
    %v1766 = vsel %vm1759, %v1762, %v1765
    %v1767 = vsel %vm1756, nan, %v1766
    %v1768 = vand.u32 2147483647, %v206
    %vm1769 = vcmp.le.f32.partialorder %v1768, 0.7853982
    %vm1770 = vcmp.lt.s32.totalorder %v206, 0
    %v1771 = vand.u32 %v206, 2139095040
    %v1772 = vshrl.u32 %v1771, 23
    %v1773 = vsub.s32 %v1772, 127
    %v1774 = vand.u32 2147483647, %v206
    %v1775 = vand.u32 %v1774, 8388607
    %v1776 = vor.u32 %v1775, 8388608
    %v1777 = vsub.s32 0, %v1776
    %v1778 = vadd.s32 %v1773, 1
    %vm1779 = vcmp.gt.s32.totalorder %v1778, 0
    %v1780 = vsel %vm1779, %v1778, 0
    %v1781 = vshrl.u32 %v1780, 5
    %v1782 = vand.u32 %v1780, 31
    %v1783 = vsub.s32 32, %v1782
    %v1784 = vshrl.u32 683565275, %v1783
    %v1785 = vshll.u32 683565275, %v1782
    %v1786 = vshrl.u32 2475754826, %v1783
    %v1787 = vor.u32 %v1785, %v1786
    %v1788 = vshll.u32 2475754826, %v1782
    %v1789 = vshrl.u32 2131351028, %v1783
    %v1790 = vor.u32 %v1788, %v1789
    %v1791 = vshll.u32 2131351028, %v1782
    %v1792 = vshrl.u32 2102212464, %v1783
    %v1793 = vor.u32 %v1791, %v1792
    %v1794 = vshll.u32 2102212464, %v1782
    %v1795 = vshrl.u32 920167782, %v1783
    %v1796 = vor.u32 %v1794, %v1795
    %v1797 = vshll.u32 920167782, %v1782
    %v1798 = vshrl.u32 1326507024, %v1783
    %v1799 = vor.u32 %v1797, %v1798
    %vm1800 = vcmp.lt.s32.totalorder %v1781, 1
    %vm1801 = vcmp.lt.s32.totalorder %v1781, 2
    %vm1802 = vcmp.lt.s32.totalorder %v1781, 3
    %vm1803 = vcmp.lt.s32.totalorder %v1781, 4
    %v1804 = vsel %vm1800, %v1784, %v1787
    %v1805 = vsel %vm1803, %v1793, 2102212464
    %v1806 = vsel %vm1802, %v1790, %v1805
    %v1807 = vsel %vm1801, %v1804, %v1806
    %v1808 = vsel %vm1800, %v1787, %v1790
    %v1809 = vsel %vm1803, %v1796, 920167782
    %v1810 = vsel %vm1802, %v1793, %v1809
    %v1811 = vsel %vm1801, %v1808, %v1810
    %v1812 = vsel %vm1800, %v1790, %v1793
    %v1813 = vsel %vm1803, %v1799, 1326507024
    %v1814 = vsel %vm1802, %v1796, %v1813
    %v1815 = vsel %vm1801, %v1812, %v1814
    %v1816 = vshll.u32 %v1776, 8
    %v1817 = vmul.u32.u64.compose %v1816, %v1815
    %v1818 = vextract.low.u32 %v1817
    %v1819 = vextract.high.u32 %v1817
    %v1820 = vmul.u32.u64.compose %v1816, %v1811
    %v1821 = vextract.low.u32 %v1820
    %v1822 = vextract.high.u32 %v1820
    %v1823 = vmul.u32 %v1816, %v1807
    %v1824 = vadd.s32 %v1819, %v1821
    %vm1825 = vc.u32 %v1819, %v1821
    %v1826 = vadd.s32 %v1822, 1
    %v1827 = vsel %vm1825, %v1826, %v1822
    %v1828 = vadd.s32 %v1823, %v1827
    %v1829 = vadd.s32 %v1828, 536870912
    %v1830 = vshrl.u32 %v1829, 30
    %v1831 = vshll.u32 %v1830, 30
    %v1832 = vsub.s32 %v1828, %v1831
    %vm1833 = vcmp.lt.s32.totalorder %v1832, 0
    %v1834 = vsub.s32 0, %v1832
    %v1835 = vsel %vm1833, %v1834, %v1832
    %v1836 = vclz %v1835
    %v1837 = vsub.s32 %v1836, 2
    %vm1838 = vcmp.gt.s32.totalorder 0, %v1837
    %v1839 = vsel %vm1838, 0, %v1837
    %v1840 = vsub.s32 32, %v1839
    %v1841 = vshll.u32 %v1832, %v1839
    %v1842 = vshrl.u32 %v1824, %v1840
    %v1843 = vor.u32 %v1841, %v1842
    %v1844 = vsub.s32 4294967266, %v1839
    %v1845 = vadd.s32 %v1844, 127
    %v1846 = vshll.u32 %v1845, 23
    %v1847 = vor.u32 4788187, %v1846
    %v1848 = vand.u32 2147483647, %v1847
    %v1850 = vcvt.s32.f32 %v1843
    %v1851 = vmul.f32 %v1850, %v1848
    %v1852 = vxor.u32 %v1851, 2147483648
    %v1853 = vsel %vm1770, %v1852, %v1851
    %v1854 = vsub.s32 4, %v1830
    %v1855 = vsel %vm1770, %v1854, %v1830
    %v1856 = vsel %vm1769, %v206, %v1853
    %v1857 = vsel %vm1769, 0, %v1855
    %v1858 = vcosq.f32.pop %v1856
    %v1859 = vsinq.f32.pop %v1856
    %vm1860 = vweird.f32 %v206
    %v1861 = vadd.s32 %v1857, 3
    %v1862 = vand.u32 %v1861, 3
    %vm1863 = vcmp.lt.s32.totalorder %v1862, 2
    %vm1864 = vcmp.eq.s32.totalorder %v1862, 0
    %v1865 = vxor.u32 %v1859, 2147483648
    %v1866 = vsel %vm1864, %v1858, %v1865
    %vm1867 = vcmp.eq.s32.totalorder %v1862, 2
    %v1868 = vxor.u32 %v1858, 2147483648
    %v1869 = vsel %vm1867, %v1868, %v1859
    %v1870 = vsel %vm1863, %v1866, %v1869
    %v1871 = vsel %vm1860, nan, %v1870
    %1872 = vst [vmem:[#allocation7] sm:$0xff] %v311
    %1873 = vst [vmem:[#allocation7 + $0x8] sm:$0xff] %v415
    %1874 = vst [vmem:[#allocation7 + $0x10] sm:$0xff] %v519
    %1875 = vst [vmem:[#allocation7 + $0x18] sm:$0xff] %v623
    %1876 = vst [vmem:[#allocation7 + $0x20] sm:$0xff] %v727
    %1877 = vst [vmem:[#allocation7 + $0x28] sm:$0xff] %v831
    %1878 = vst [vmem:[#allocation7 + $0x30] sm:$0xff] %v935
    %1879 = vst [vmem:[#allocation7 + $0x38] sm:$0xff] %v1039
    %1880 = vst [vmem:[#allocation7 + $0x40] sm:$0xff] %v1143
    %1881 = vst [vmem:[#allocation7 + $0x48] sm:$0xff] %v1247
    %1882 = vst [vmem:[#allocation7 + $0x50] sm:$0xff] %v1351
    %1883 = vst [vmem:[#allocation7 + $0x58] sm:$0xff] %v1455
    %1884 = vst [vmem:[#allocation7 + $0x60] sm:$0xff] %v1559
    %1885 = vst [vmem:[#allocation7 + $0x68] sm:$0xff] %v1663
    %1886 = vst [vmem:[#allocation7 + $0x70] sm:$0xff] %v1767
    %1887 = vst [vmem:[#allocation7 + $0x78] sm:$0xff] %v1871
    // Predicated region
    $region22: #{tpu_custom_call.1} parent=1 // pred_check
      _
    $region23: #{tpu_custom_call.1} parent=1 // pred_check_branch
      %1889 = sbr.rel (0) target = $region25
    $region24: #{tpu_custom_call.1} parent=1 // pred_region
      %s1891 = ssub.s32 2048, 2048
      %1892 = vsyncadd [#allocation4], %s1891
      %s1893 = sshll.u32 [#allocation7], 4
      %s1894 = int_to_ptr.vmem [resolvable:$true] %s1893
      %1899 = dma.vmem_to_hbm [thread:$0]  %s1894, 2048, %s3, [#allocation4], 256, 256, 16
    $region25: #{tpu_custom_call.1} parent=1 // pred_fallthru
      _
    // Predicated region
    $region26: #{tpu_custom_call.1} parent=1 // pred_check
      _
    $region27: #{tpu_custom_call.1} parent=1 // pred_check_branch
      %1901 = sbr.rel (0) target = $region29
    $region28: #{tpu_custom_call.1} parent=1 // pred_region
      %1902 = dma.done [#allocation4], 2048
    $region29: #{tpu_custom_call.1} parent=1 // pred_fallthru
      _
    %1903 = vsyncpa [#allocation3], 1
    %1904 = vsyncpa [#allocation6], 1
    %1905 = vsyncpa [#allocation4], 1

</llo_original>
